<compile_context>
chip_gen: v6e
topology: v6e:2x2x1
jax: 0.10.0
libtpu: 0.0.40
codegen_flags: <defaults>
</compile_context>

<pallas_src>
import math
from functools import partial

import jax
import jax.numpy as jnp
from jax.experimental import pallas as pl
from jax.experimental.pallas import tpu as pltpu

_LANE = 128


def _chunk_rows(rows, target):
    """Row-chunk size: the whole thing if it fits, else a multiple of 8 <= target."""
    if rows <= target:
        return rows
    return max(8, target - target % 8)


# --------------------------------------------------------------------------
# distortion: per-image masked SSE and clamped SSE
# --------------------------------------------------------------------------
def _distortion_kernel(xhat_ref, tgt_ref, mask_ref, roi_ref, clamp_ref,
                       roi_acc, clamp_acc, *, rows_total, need_mask):
    k = pl.program_id(1)

    @pl.when(k == 0)
    def _():
        roi_acc[...] = jnp.zeros_like(roi_acc)
        clamp_acc[...] = jnp.zeros_like(clamp_acc)

    x = xhat_ref[0].astype(jnp.float32)    # (C, R, 128)
    t = tgt_ref[0].astype(jnp.float32)     # (C, R, 128)
    m = mask_ref[0].astype(jnp.float32)    # (1, R, 128), broadcasts over C

    d = x - t
    # Sum over C only: pure VPU vreg adds into the (R, 128) accumulator.
    roi_c = jnp.sum(d * d * m, axis=0)

    dc = jnp.clip(x, 0.0, 1.0) - t
    clamp_c = jnp.sum(dc * dc, axis=0)

    if need_mask:
        # Partial last block: out-of-bounds rows contain unspecified data, so
        # select (not multiply) to drop them before accumulation.
        r = roi_acc.shape[0]
        row = jax.lax.broadcasted_iota(jnp.int32, (r, _LANE), 0)
        valid = (k * r + row) < rows_total
        roi_c = jnp.where(valid, roi_c, 0.0)
        clamp_c = jnp.where(valid, clamp_c, 0.0)

    roi_acc[...] += roi_c
    clamp_acc[...] += clamp_c

    @pl.when(k == pl.num_programs(1) - 1)
    def _():
        # Single cross-lane/sublane reduce per image, tiny (1,1,1) output block.
        roi_ref[...] = jnp.sum(roi_acc[...]).reshape(1, 1, 1)
        clamp_ref[...] = jnp.sum(clamp_acc[...]).reshape(1, 1, 1)


def _masked_sse_sums(x_hat, target, mask, chunk_rows=512):
    """Returns (roi_sse[N], clamp_sse[N]) computed in a Pallas kernel."""
    N, C, H, W = target.shape
    HW = H * W

    if HW % _LANE != 0:
        # TODO(synk): non-lane-aligned pixel counts fall back to a single fused
        # XLA pass (still one read of each tensor).
        xf = x_hat.astype(jnp.float32)
        tf = target.astype(jnp.float32)
        mf = mask.astype(jnp.float32)
        roi = jnp.sum((xf - tf) ** 2 * mf, axis=(1, 2, 3))
        clamp = jnp.sum((jnp.clip(xf, 0.0, 1.0) - tf) ** 2, axis=(1, 2, 3))
        return roi, clamp

    rows = HW // _LANE
    r = _chunk_rows(rows, chunk_rows)
    nchunks = pl.cdiv(rows, r)
    need_mask = (rows % r) != 0

    xh = x_hat.reshape(N, C, rows, _LANE)      # views, no glue-side copies
    tg = target.reshape(N, C, rows, _LANE)
    mk = mask.reshape(N, 1, rows, _LANE)

    roi, clamp = pl.pallas_call(
        partial(_distortion_kernel, rows_total=rows, need_mask=need_mask),
        out_shape=(
            jax.ShapeDtypeStruct((N, 1, 1), jnp.float32),
            jax.ShapeDtypeStruct((N, 1, 1), jnp.float32),
        ),
        grid=(N, nchunks),
        in_specs=[
            pl.BlockSpec((1, C, r, _LANE), lambda n, k: (n, 0, k, 0)),
            pl.BlockSpec((1, C, r, _LANE), lambda n, k: (n, 0, k, 0)),
            pl.BlockSpec((1, 1, r, _LANE), lambda n, k: (n, 0, k, 0)),
        ],
        out_specs=[
            pl.BlockSpec((1, 1, 1), lambda n, k: (n, 0, 0)),
            pl.BlockSpec((1, 1, 1), lambda n, k: (n, 0, 0)),
        ],
        scratch_shapes=[
            pltpu.VMEM((r, _LANE), jnp.float32),
            pltpu.VMEM((r, _LANE), jnp.float32),
        ],
        compiler_params=pltpu.CompilerParams(
            dimension_semantics=("parallel", "arbitrary")),
    )(xh, tg, mk)
    return roi[:, 0, 0], clamp[:, 0, 0]


# --------------------------------------------------------------------------
# rate: sum(log(likelihoods)) over all elements
# --------------------------------------------------------------------------
def _logsum_kernel(lik_ref, out_ref, acc_ref, *, rows_total, need_mask):
    k = pl.program_id(0)

    @pl.when(k == 0)
    def _():
        acc_ref[...] = jnp.zeros_like(acc_ref)

    # EUP log + VPU add into the resident accumulator; DMA of the next chunk
    # overlaps with this compute.
    v = jnp.log(lik_ref[...].astype(jnp.float32))
    if need_mask:
        r = acc_ref.shape[0]
        row = jax.lax.broadcasted_iota(jnp.int32, (r, _LANE), 0)
        v = jnp.where((k * r + row) < rows_total, v, 0.0)
    acc_ref[...] += v

    @pl.when(k == pl.num_programs(0) - 1)
    def _():
        out_ref[...] = jnp.sum(acc_ref[...]).reshape(1, 1)


def _log_sum(likelihoods, chunk_rows=2048):
    """sum(log(likelihoods)) over all elements; bulk via Pallas, no copies."""
    total = likelihoods.size
    if total == 0:
        return jnp.zeros((), jnp.float32)
    if total % _LANE != 0:
        # TODO(synk): non-128-aligned element counts use one fused XLA log+sum
        # pass instead of padding/copying the tensor.
        return jnp.sum(jnp.log(likelihoods.astype(jnp.float32)))

    rows = total // _LANE
    chunk = _chunk_rows(rows, chunk_rows)
    nchunks = pl.cdiv(rows, chunk)
    need_mask = (rows % chunk) != 0
    x2 = likelihoods.reshape(rows, _LANE)

    out = pl.pallas_call(
        partial(_logsum_kernel, rows_total=rows, need_mask=need_mask),
        out_shape=jax.ShapeDtypeStruct((1, 1), jnp.float32),
        grid=(nchunks,),
        in_specs=[pl.BlockSpec((chunk, _LANE), lambda k: (k, 0))],
        out_specs=pl.BlockSpec((1, 1), lambda k: (0, 0)),
        scratch_shapes=[pltpu.VMEM((chunk, _LANE), jnp.float32)],
        compiler_params=pltpu.CompilerParams(
            dimension_semantics=("arbitrary",)),
    )(x2)
    return out[0, 0]


# --------------------------------------------------------------------------
# loss (glue)
# --------------------------------------------------------------------------
def rate_distortion_loss(output, target, mask, lmbdamap, lmbda=0.01,
                         dist_chunk_rows=512, log_chunk_rows=2048):
    """JAX/Pallas equivalent of RateDistortionLoss.forward (mask is not None path).

    output: {'x_hat': (N,C,H,W), 'likelihoods': {name: tensor, ...}}
    target: (N,C,H,W), mask: (N,1,H,W), lmbdamap: (N,)
    """
    # NOTE: `lmbda` is stored in the PyTorch module but unused in forward.
    # TODO(synk): mask=None branch in PyTorch returns the full elementwise MSE
    # tensor and then dereferences an undefined roi_mse; only the masked path
    # is implemented here.
    N, C, H, W = target.shape
    num_pixels = N * H * W

    roi_sse, clamp_sse = _masked_sse_sums(output['x_hat'], target, mask,
                                          chunk_rows=dist_chunk_rows)
    log_sums = [_log_sum(l, chunk_rows=log_chunk_rows)
                for l in output['likelihoods'].values()]

    out = {}
    out['bpp_loss'] = sum(log_sums) / (-math.log(2) * num_pixels)

    roi_mse_per_img = roi_sse / float(C * H * W)          # torch.mean over [1,2,3]
    out['mse_loss'] = jnp.mean(roi_mse_per_img)
    roi_scalar = jnp.mean(roi_mse_per_img * lmbdamap.reshape(-1))

    out['rdloss'] = 255.0 ** 2 * roi_scalar + out['bpp_loss']

    psnr_mse = jnp.sum(clamp_sse) / float(N * C * H * W)
    out['psnr'] = 10.0 * jnp.log10(1.0 / psnr_mse)
    return out


if __name__ == "__main__":
    key = jax.random.PRNGKey(0)
    k1, k2, k3, k4, k5, k6, k7 = jax.random.split(key, 7)

    N, C, H, W = 2, 3, 64, 64
    x_hat = jax.random.uniform(k1, (N, C, H, W), jnp.float32, -0.1, 1.1)
    target = jax.random.uniform(k2, (N, C, H, W), jnp.float32, 0.0, 1.0)
    mask = (jax.random.uniform(k3, (N, 1, H, W)) > 0.5).astype(jnp.float32)
    lmbdamap = jax.random.uniform(k4, (N,), jnp.float32, 0.001, 0.05)
    lik_y = jax.random.uniform(k5, (N, 32, 16, 16), jnp.float32, 0.01, 1.0)  # rows=128 (even chunks)
    lik_w = jax.random.uniform(k6, (N, 8, 24, 16), jnp.float32, 0.01, 1.0)   # rows=48 (masked last chunk)
    lik_z = jax.random.uniform(k7, (N, 5, 6, 7), jnp.float32, 0.01, 1.0)     # 420 elems (XLA fallback)

    output = {'x_hat': x_hat, 'likelihoods': {'y': lik_y, 'w': lik_w, 'z': lik_z}}

    # Small chunk sizes here so the multi-chunk accumulate, masked-last-block
    # and finalize paths are all exercised at test shapes (production defaults:
    # 512 / 2048 rows).
    loss_fn = jax.jit(partial(rate_distortion_loss,
                              dist_chunk_rows=24, log_chunk_rows=32))
    out = loss_fn(output, target, mask, lmbdamap)
    out = {k: jax.block_until_ready(v) for k, v in out.items()}

    # Pure-JAX reference for correctness.
    num_pixels = N * H * W
    ref_bpp = (jnp.sum(jnp.log(lik_y)) + jnp.sum(jnp.log(lik_w))
               + jnp.sum(jnp.log(lik_z))) / (-math.log(2) * num_pixels)
    mse = (x_hat - target) ** 2
    roi_mse_n = jnp.mean(mse * jnp.broadcast_to(mask, target.shape), axis=(1, 2, 3))
    ref_mse_loss = jnp.mean(roi_mse_n)
    ref_roi = jnp.mean(roi_mse_n * lmbdamap)
    ref_rd = 255.0 ** 2 * ref_roi + ref_bpp
    ref_psnr = 10.0 * jnp.log10(1.0 / jnp.mean((jnp.clip(x_hat, 0, 1) - target) ** 2))

    def _close(a, b, tol=1e-4):
        a, b = float(a), float(b)
        return abs(a - b) <= tol * (1.0 + abs(b))

    assert _close(out['bpp_loss'], ref_bpp), (out['bpp_loss'], ref_bpp)
    assert _close(out['mse_loss'], ref_mse_loss), (out['mse_loss'], ref_mse_loss)
    assert _close(out['rdloss'], ref_rd), (out['rdloss'], ref_rd)
    assert _close(out['psnr'], ref_psnr), (out['psnr'], ref_psnr)

    print("KERNEL_OK")
</pallas_src>

<mosaic_0001>
module attributes {stable_mosaic.version = 11 : i64} {
  func.func @_logsum_kernel(%arg0: i32, %arg1: memref<32x128xf32, #tpu.memory_space<vmem>>, %arg2: memref<1x1xf32, #tpu.memory_space<vmem>>, %arg3: memref<32x128xf32, #tpu.memory_space<vmem>>) attributes {dimension_semantics = [#tpu.dimension_semantics<arbitrary>], iteration_bounds = array<i64: 2>, scalar_prefetch = 0 : i64, scratch_operands = 1 : i64, tpu.core_type = #tpu.core_type<tc>, window_params = [{transform_indices = @transform_0, window_bounds = array<i64: 32, 128>}, {pipeline_mode = #tpu.pipeline_mode<synchronous>, transform_indices = @transform_1, window_bounds = array<i64: 1, 1>}]} {
    %c0_i32 = arith.constant 0 : i32
    %0 = arith.cmpi eq, %arg0, %c0_i32 : i32
    %1 = arith.extui %0 : i1 to i32
    %c0_i32_0 = arith.constant 0 : i32
    %2 = arith.cmpi ne, %1, %c0_i32_0 : i32
    scf.if %2 {
      %cst_7 = arith.constant 0.000000e+00 : f32
      %19 = vector.broadcast %cst_7 : f32 to vector<32x128xf32>
      %c0_8 = arith.constant 0 : index
      %c0_9 = arith.constant 0 : index
      %20 = vector.load %arg3[%c0_8, %c0_9] : memref<32x128xf32, #tpu.memory_space<vmem>>, vector<32x128xf32>
      tpu.vector_store %arg3[%c0_8, %c0_9], %19 {strides = array<i32>} : memref<32x128xf32, #tpu.memory_space<vmem>>, vector<32x128xf32>,
    } else {
    }
    %c0 = arith.constant 0 : index
    %c0_1 = arith.constant 0 : index
    %3 = vector.load %arg1[%c0, %c0_1] : memref<32x128xf32, #tpu.memory_space<vmem>>, vector<32x128xf32>
    %4 = math.log %3 : vector<32x128xf32>
    %5 = tpu.iota {dimensions = array<i32: 0>} : vector<32x128xi32>
    %c32_i32 = arith.constant 32 : i32
    %6 = arith.muli %arg0, %c32_i32 : i32
    %7 = vector.broadcast %6 : i32 to vector<32x128xi32>
    %8 = arith.addi %7, %5 : vector<32x128xi32>
    %c48_i32 = arith.constant 48 : i32
    %9 = vector.broadcast %c48_i32 : i32 to vector<32x128xi32>
    %10 = arith.cmpi slt, %8, %9 : vector<32x128xi32>
    %cst = arith.constant 0.000000e+00 : f32
    %11 = vector.broadcast %cst : f32 to vector<32x128xf32>
    %12 = arith.select %10, %4, %11 : vector<32x128xi1>, vector<32x128xf32>
    %c0_2 = arith.constant 0 : index
    %c0_3 = arith.constant 0 : index
    %13 = vector.load %arg3[%c0_2, %c0_3] : memref<32x128xf32, #tpu.memory_space<vmem>>, vector<32x128xf32>
    %14 = arith.addf %13, %12 : vector<32x128xf32>
    %c0_4 = arith.constant 0 : index
    %c0_5 = arith.constant 0 : index
    %15 = vector.load %arg3[%c0_4, %c0_5] : memref<32x128xf32, #tpu.memory_space<vmem>>, vector<32x128xf32>
    tpu.vector_store %arg3[%c0_4, %c0_5], %14 {strides = array<i32>} : memref<32x128xf32, #tpu.memory_space<vmem>>, vector<32x128xf32>,
    %c1_i32 = arith.constant 1 : i32
    %16 = arith.cmpi eq, %arg0, %c1_i32 : i32
    %17 = arith.extui %16 : i1 to i32
    %c0_i32_6 = arith.constant 0 : i32
    %18 = arith.cmpi ne, %17, %c0_i32_6 : i32
    scf.if %18 {
      %c0_7 = arith.constant 0 : index
      %c0_8 = arith.constant 0 : index
      %19 = vector.load %arg3[%c0_7, %c0_8] : memref<32x128xf32, #tpu.memory_space<vmem>>, vector<32x128xf32>
      %20 = vector.shape_cast %19 : vector<32x128xf32> to vector<1x32x128xf32>
      %cst_9 = arith.constant dense<0.000000e+00> : vector<1xf32>
      %21 = vector.multi_reduction <add>, %20, %cst_9 [1, 2] : vector<1x32x128xf32> to vector<1xf32>
      %22 = vector.shape_cast %21 : vector<1xf32> to vector<1x1x1xf32>
      %23 = vector.extract %22[0, 0, 0] : f32 from vector<1x1x1xf32>
      %24 = vector.broadcast %23 : f32 to vector<1x1xf32>
      %c0_10 = arith.constant 0 : index
      %c0_11 = arith.constant 0 : index
      %25 = vector.load %arg2[%c0_10, %c0_11] : memref<1x1xf32, #tpu.memory_space<vmem>>, vector<1x1xf32>
      tpu.vector_store %arg2[%c0_10, %c0_11], %24 {strides = array<i32>} : memref<1x1xf32, #tpu.memory_space<vmem>>, vector<1x1xf32>,
    } else {
    }
    return
  }
  func.func @transform_0(%arg0: i32) -> (i32, i32) {
    %c0_i32 = arith.constant 0 : i32
    %c0_i32_0 = arith.constant 0 : i32
    return %arg0, %c0_i32 : i32, i32
  }
  func.func @transform_1(%arg0: i32) -> (i32, i32) {
    %c0_i32 = arith.constant 0 : i32
    %c0_i32_0 = arith.constant 0 : i32
    %c0_i32_1 = arith.constant 0 : i32
    return %c0_i32, %c0_i32_0 : i32, i32
  }
}

module attributes {stable_mosaic.version = 11 : i64} {
  func.func @_logsum_kernel(%arg0: i32, %arg1: memref<32x128xf32, #tpu.memory_space<vmem>>, %arg2: memref<1x1xf32, #tpu.memory_space<vmem>>, %arg3: memref<32x128xf32, #tpu.memory_space<vmem>>) attributes {dimension_semantics = [#tpu.dimension_semantics<arbitrary>], iteration_bounds = array<i64: 4>, scalar_prefetch = 0 : i64, scratch_operands = 1 : i64, tpu.core_type = #tpu.core_type<tc>, window_params = [{transform_indices = @transform_0, window_bounds = array<i64: 32, 128>}, {pipeline_mode = #tpu.pipeline_mode<synchronous>, transform_indices = @transform_1, window_bounds = array<i64: 1, 1>}]} {
    %c0_i32 = arith.constant 0 : i32
    %0 = arith.cmpi eq, %arg0, %c0_i32 : i32
    %1 = arith.extui %0 : i1 to i32
    %c0_i32_0 = arith.constant 0 : i32
    %2 = arith.cmpi ne, %1, %c0_i32_0 : i32
    scf.if %2 {
      %cst = arith.constant 0.000000e+00 : f32
      %11 = vector.broadcast %cst : f32 to vector<32x128xf32>
      %c0_7 = arith.constant 0 : index
      %c0_8 = arith.constant 0 : index
      %12 = vector.load %arg3[%c0_7, %c0_8] : memref<32x128xf32, #tpu.memory_space<vmem>>, vector<32x128xf32>
      tpu.vector_store %arg3[%c0_7, %c0_8], %11 {strides = array<i32>} : memref<32x128xf32, #tpu.memory_space<vmem>>, vector<32x128xf32>,
    } else {
    }
    %c0 = arith.constant 0 : index
    %c0_1 = arith.constant 0 : index
    %3 = vector.load %arg1[%c0, %c0_1] : memref<32x128xf32, #tpu.memory_space<vmem>>, vector<32x128xf32>
    %4 = math.log %3 : vector<32x128xf32>
    %c0_2 = arith.constant 0 : index
    %c0_3 = arith.constant 0 : index
    %5 = vector.load %arg3[%c0_2, %c0_3] : memref<32x128xf32, #tpu.memory_space<vmem>>, vector<32x128xf32>
    %6 = arith.addf %5, %4 : vector<32x128xf32>
    %c0_4 = arith.constant 0 : index
    %c0_5 = arith.constant 0 : index
    %7 = vector.load %arg3[%c0_4, %c0_5] : memref<32x128xf32, #tpu.memory_space<vmem>>, vector<32x128xf32>
    tpu.vector_store %arg3[%c0_4, %c0_5], %6 {strides = array<i32>} : memref<32x128xf32, #tpu.memory_space<vmem>>, vector<32x128xf32>,
    %c3_i32 = arith.constant 3 : i32
    %8 = arith.cmpi eq, %arg0, %c3_i32 : i32
    %9 = arith.extui %8 : i1 to i32
    %c0_i32_6 = arith.constant 0 : i32
    %10 = arith.cmpi ne, %9, %c0_i32_6 : i32
    scf.if %10 {
      %c0_7 = arith.constant 0 : index
      %c0_8 = arith.constant 0 : index
      %11 = vector.load %arg3[%c0_7, %c0_8] : memref<32x128xf32, #tpu.memory_space<vmem>>, vector<32x128xf32>
      %12 = vector.shape_cast %11 : vector<32x128xf32> to vector<1x32x128xf32>
      %cst = arith.constant dense<0.000000e+00> : vector<1xf32>
      %13 = vector.multi_reduction <add>, %12, %cst [1, 2] : vector<1x32x128xf32> to vector<1xf32>
      %14 = vector.shape_cast %13 : vector<1xf32> to vector<1x1x1xf32>
      %15 = vector.extract %14[0, 0, 0] : f32 from vector<1x1x1xf32>
      %16 = vector.broadcast %15 : f32 to vector<1x1xf32>
      %c0_9 = arith.constant 0 : index
      %c0_10 = arith.constant 0 : index
      %17 = vector.load %arg2[%c0_9, %c0_10] : memref<1x1xf32, #tpu.memory_space<vmem>>, vector<1x1xf32>
      tpu.vector_store %arg2[%c0_9, %c0_10], %16 {strides = array<i32>} : memref<1x1xf32, #tpu.memory_space<vmem>>, vector<1x1xf32>,
    } else {
    }
    return
  }
  func.func @transform_0(%arg0: i32) -> (i32, i32) {
    %c0_i32 = arith.constant 0 : i32
    %c0_i32_0 = arith.constant 0 : i32
    return %arg0, %c0_i32 : i32, i32
  }
  func.func @transform_1(%arg0: i32) -> (i32, i32) {
    %c0_i32 = arith.constant 0 : i32
    %c0_i32_0 = arith.constant 0 : i32
    %c0_i32_1 = arith.constant 0 : i32
    return %c0_i32, %c0_i32_0 : i32, i32
  }
}

module attributes {stable_mosaic.version = 11 : i64} {
  func.func @_distortion_kernel(%arg0: i32, %arg1: i32, %arg2: memref<1x3x24x128xf32, #tpu.memory_space<vmem>>, %arg3: memref<1x3x24x128xf32, #tpu.memory_space<vmem>>, %arg4: memref<1x1x24x128xf32, #tpu.memory_space<vmem>>, %arg5: memref<1x1x1xf32, #tpu.memory_space<vmem>>, %arg6: memref<1x1x1xf32, #tpu.memory_space<vmem>>, %arg7: memref<24x128xf32, #tpu.memory_space<vmem>>, %arg8: memref<24x128xf32, #tpu.memory_space<vmem>>) attributes {dimension_semantics = [#tpu.dimension_semantics<parallel>, #tpu.dimension_semantics<arbitrary>], iteration_bounds = array<i64: 2, 2>, scalar_prefetch = 0 : i64, scratch_operands = 2 : i64, tpu.core_type = #tpu.core_type<tc>, window_params = [{transform_indices = @transform_0, window_bounds = array<i64: 1, 3, 24, 128>}, {transform_indices = @transform_1, window_bounds = array<i64: 1, 3, 24, 128>}, {transform_indices = @transform_2, window_bounds = array<i64: 1, 1, 24, 128>}, {transform_indices = @transform_3, window_bounds = array<i64: 1, 1, 1>}, {transform_indices = @transform_4, window_bounds = array<i64: 1, 1, 1>}]} {
    %c0_i32 = arith.constant 0 : i32
    %0 = arith.cmpi eq, %arg1, %c0_i32 : i32
    %1 = arith.extui %0 : i1 to i32
    %c0_i32_0 = arith.constant 0 : i32
    %2 = arith.cmpi ne, %1, %c0_i32_0 : i32
    scf.if %2 {
      %cst_26 = arith.constant 0.000000e+00 : f32
      %40 = vector.broadcast %cst_26 : f32 to vector<24x128xf32>
      %c0_27 = arith.constant 0 : index
      %c0_28 = arith.constant 0 : index
      %41 = vector.load %arg7[%c0_27, %c0_28] : memref<24x128xf32, #tpu.memory_space<vmem>>, vector<24x128xf32>
      tpu.vector_store %arg7[%c0_27, %c0_28], %40 {strides = array<i32>} : memref<24x128xf32, #tpu.memory_space<vmem>>, vector<24x128xf32>,
      %cst_29 = arith.constant 0.000000e+00 : f32
      %42 = vector.broadcast %cst_29 : f32 to vector<24x128xf32>
      %c0_30 = arith.constant 0 : index
      %c0_31 = arith.constant 0 : index
      %43 = vector.load %arg8[%c0_30, %c0_31] : memref<24x128xf32, #tpu.memory_space<vmem>>, vector<24x128xf32>
      tpu.vector_store %arg8[%c0_30, %c0_31], %42 {strides = array<i32>} : memref<24x128xf32, #tpu.memory_space<vmem>>, vector<24x128xf32>,
    } else {
    }
    %c0 = arith.constant 0 : index
    %c0_1 = arith.constant 0 : index
    %c0_2 = arith.constant 0 : index
    %c0_3 = arith.constant 0 : index
    %3 = vector.load %arg2[%c0, %c0_1, %c0_2, %c0_3] : memref<1x3x24x128xf32, #tpu.memory_space<vmem>>, vector<1x3x24x128xf32>
    %4 = vector.shape_cast %3 : vector<1x3x24x128xf32> to vector<3x24x128xf32>
    %c0_4 = arith.constant 0 : index
    %c0_5 = arith.constant 0 : index
    %c0_6 = arith.constant 0 : index
    %c0_7 = arith.constant 0 : index
    %5 = vector.load %arg3[%c0_4, %c0_5, %c0_6, %c0_7] : memref<1x3x24x128xf32, #tpu.memory_space<vmem>>, vector<1x3x24x128xf32>
    %6 = vector.shape_cast %5 : vector<1x3x24x128xf32> to vector<3x24x128xf32>
    %c0_8 = arith.constant 0 : index
    %c0_9 = arith.constant 0 : index
    %c0_10 = arith.constant 0 : index
    %c0_11 = arith.constant 0 : index
    %7 = vector.load %arg4[%c0_8, %c0_9, %c0_10, %c0_11] : memref<1x1x24x128xf32, #tpu.memory_space<vmem>>, vector<1x1x24x128xf32>
    %8 = vector.shape_cast %7 : vector<1x1x24x128xf32> to vector<1x24x128xf32>
    %9 = arith.subf %4, %6 : vector<3x24x128xf32>
    %10 = arith.mulf %9, %9 : vector<3x24x128xf32>
    %11 = vector.broadcast %8 : vector<1x24x128xf32> to vector<3x24x128xf32>
    %12 = arith.mulf %10, %11 : vector<3x24x128xf32>
    %cst = arith.constant dense<0.000000e+00> : vector<24x128xf32>
    %13 = vector.multi_reduction <add>, %12, %cst [0] : vector<3x24x128xf32> to vector<24x128xf32>
    %cst_12 = arith.constant 0.000000e+00 : f32
    %cst_13 = arith.constant 1.000000e+00 : f32
    %14 = vector.broadcast %cst_12 : f32 to vector<3x24x128xf32>
    %15 = arith.maximumf %14, %4 : vector<3x24x128xf32>
    %16 = vector.broadcast %cst_13 : f32 to vector<3x24x128xf32>
    %17 = arith.minimumf %16, %15 : vector<3x24x128xf32>
    %18 = arith.subf %17, %6 : vector<3x24x128xf32>
    %19 = arith.mulf %18, %18 : vector<3x24x128xf32>
    %cst_14 = arith.constant dense<0.000000e+00> : vector<24x128xf32>
    %20 = vector.multi_reduction <add>, %19, %cst_14 [0] : vector<3x24x128xf32> to vector<24x128xf32>
    %21 = tpu.iota {dimensions = array<i32: 0>} : vector<24x128xi32>
    %c24_i32 = arith.constant 24 : i32
    %22 = arith.muli %arg1, %c24_i32 : i32
    %23 = vector.broadcast %22 : i32 to vector<24x128xi32>
    %24 = arith.addi %23, %21 : vector<24x128xi32>
    %c32_i32 = arith.constant 32 : i32
    %25 = vector.broadcast %c32_i32 : i32 to vector<24x128xi32>
    %26 = arith.cmpi slt, %24, %25 : vector<24x128xi32>
    %cst_15 = arith.constant 0.000000e+00 : f32
    %27 = vector.broadcast %cst_15 : f32 to vector<24x128xf32>
    %28 = arith.select %26, %13, %27 : vector<24x128xi1>, vector<24x128xf32>
    %cst_16 = arith.constant 0.000000e+00 : f32
    %29 = vector.broadcast %cst_16 : f32 to vector<24x128xf32>
    %30 = arith.select %26, %20, %29 : vector<24x128xi1>, vector<24x128xf32>
    %c0_17 = arith.constant 0 : index
    %c0_18 = arith.constant 0 : index
    %31 = vector.load %arg7[%c0_17, %c0_18] : memref<24x128xf32, #tpu.memory_space<vmem>>, vector<24x128xf32>
    %32 = arith.addf %31, %28 : vector<24x128xf32>
    %c0_19 = arith.constant 0 : index
    %c0_20 = arith.constant 0 : index
    %33 = vector.load %arg7[%c0_19, %c0_20] : memref<24x128xf32, #tpu.memory_space<vmem>>, vector<24x128xf32>
    tpu.vector_store %arg7[%c0_19, %c0_20], %32 {strides = array<i32>} : memref<24x128xf32, #tpu.memory_space<vmem>>, vector<24x128xf32>,
    %c0_21 = arith.constant 0 : index
    %c0_22 = arith.constant 0 : index
    %34 = vector.load %arg8[%c0_21, %c0_22] : memref<24x128xf32, #tpu.memory_space<vmem>>, vector<24x128xf32>
    %35 = arith.addf %34, %30 : vector<24x128xf32>
    %c0_23 = arith.constant 0 : index
    %c0_24 = arith.constant 0 : index
    %36 = vector.load %arg8[%c0_23, %c0_24] : memref<24x128xf32, #tpu.memory_space<vmem>>, vector<24x128xf32>
    tpu.vector_store %arg8[%c0_23, %c0_24], %35 {strides = array<i32>} : memref<24x128xf32, #tpu.memory_space<vmem>>, vector<24x128xf32>,
    %c1_i32 = arith.constant 1 : i32
    %37 = arith.cmpi eq, %arg1, %c1_i32 : i32
    %38 = arith.extui %37 : i1 to i32
    %c0_i32_25 = arith.constant 0 : i32
    %39 = arith.cmpi ne, %38, %c0_i32_25 : i32
    scf.if %39 {
      %c0_26 = arith.constant 0 : index
      %c0_27 = arith.constant 0 : index
      %40 = vector.load %arg7[%c0_26, %c0_27] : memref<24x128xf32, #tpu.memory_space<vmem>>, vector<24x128xf32>
      %41 = vector.shape_cast %40 : vector<24x128xf32> to vector<1x24x128xf32>
      %cst_28 = arith.constant dense<0.000000e+00> : vector<1xf32>
      %42 = vector.multi_reduction <add>, %41, %cst_28 [1, 2] : vector<1x24x128xf32> to vector<1xf32>
      %43 = vector.shape_cast %42 : vector<1xf32> to vector<1x1x1xf32>
      %44 = vector.extract %43[0, 0, 0] : f32 from vector<1x1x1xf32>
      %45 = vector.broadcast %44 : f32 to vector<1x1x1xf32>
      %c0_29 = arith.constant 0 : index
      %c0_30 = arith.constant 0 : index
      %c0_31 = arith.constant 0 : index
      %46 = vector.load %arg5[%c0_29, %c0_30, %c0_31] : memref<1x1x1xf32, #tpu.memory_space<vmem>>, vector<1x1x1xf32>
      tpu.vector_store %arg5[%c0_29, %c0_30, %c0_31], %45 {strides = array<i32>} : memref<1x1x1xf32, #tpu.memory_space<vmem>>, vector<1x1x1xf32>,
      %c0_32 = arith.constant 0 : index
      %c0_33 = arith.constant 0 : index
      %47 = vector.load %arg8[%c0_32, %c0_33] : memref<24x128xf32, #tpu.memory_space<vmem>>, vector<24x128xf32>
      %48 = vector.shape_cast %47 : vector<24x128xf32> to vector<1x24x128xf32>
      %cst_34 = arith.constant dense<0.000000e+00> : vector<1xf32>
      %49 = vector.multi_reduction <add>, %48, %cst_34 [1, 2] : vector<1x24x128xf32> to vector<1xf32>
      %50 = vector.shape_cast %49 : vector<1xf32> to vector<1x1x1xf32>
      %51 = vector.extract %50[0, 0, 0] : f32 from vector<1x1x1xf32>
      %52 = vector.broadcast %51 : f32 to vector<1x1x1xf32>
      %c0_35 = arith.constant 0 : index
      %c0_36 = arith.constant 0 : index
      %c0_37 = arith.constant 0 : index
      %53 = vector.load %arg6[%c0_35, %c0_36, %c0_37] : memref<1x1x1xf32, #tpu.memory_space<vmem>>, vector<1x1x1xf32>
      tpu.vector_store %arg6[%c0_35, %c0_36, %c0_37], %52 {strides = array<i32>} : memref<1x1x1xf32, #tpu.memory_space<vmem>>, vector<1x1x1xf32>,
    } else {
    }
    return
  }
  func.func @transform_0(%arg0: i32, %arg1: i32) -> (i32, i32, i32, i32) {
    %c0_i32 = arith.constant 0 : i32
    %c0_i32_0 = arith.constant 0 : i32
    %c0_i32_1 = arith.constant 0 : i32
    return %arg0, %c0_i32, %arg1, %c0_i32_0 : i32, i32, i32, i32
  }
  func.func @transform_1(%arg0: i32, %arg1: i32) -> (i32, i32, i32, i32) {
    %c0_i32 = arith.constant 0 : i32
    %c0_i32_0 = arith.constant 0 : i32
    %c0_i32_1 = arith.constant 0 : i32
    return %arg0, %c0_i32, %arg1, %c0_i32_0 : i32, i32, i32, i32
  }
  func.func @transform_2(%arg0: i32, %arg1: i32) -> (i32, i32, i32, i32) {
    %c0_i32 = arith.constant 0 : i32
    %c0_i32_0 = arith.constant 0 : i32
    %c0_i32_1 = arith.constant 0 : i32
    return %arg0, %c0_i32, %arg1, %c0_i32_0 : i32, i32, i32, i32
  }
  func.func @transform_3(%arg0: i32, %arg1: i32) -> (i32, i32, i32) {
    %c0_i32 = arith.constant 0 : i32
    %c0_i32_0 = arith.constant 0 : i32
    %c0_i32_1 = arith.constant 0 : i32
    return %arg0, %c0_i32, %c0_i32_0 : i32, i32, i32
  }
  func.func @transform_4(%arg0: i32, %arg1: i32) -> (i32, i32, i32) {
    %c0_i32 = arith.constant 0 : i32
    %c0_i32_0 = arith.constant 0 : i32
    %c0_i32_1 = arith.constant 0 : i32
    return %arg0, %c0_i32, %c0_i32_0 : i32, i32, i32
  }
}

</mosaic_0001>

<llo_original>
// kernel: rate_distortion_loss.4
$region0: #{rate_distortion_loss.4}
  #allocation0 [shape = 'u32[]', space=smem, size = 0x4, offset = 0x4, fixed_abs, tag = 'smem constant byte address 0x4 - core index']
  #allocation1 [shape = 'u32[144,128]{1,0:T(1,128)}', space=vmem, size = 0x12000, scoped, tag = 'internal scratch']
  #allocation2 [shape = 'f32[32,128]{1,0:T(8,128)}', space=vmem, size = 0x4000, scoped, tag = 'scratch operand']
  %s0 = inlined_call_operand.vmem [shape: f32[48,128], index: 0, kind: input, shape index: {}]
  %s1 = inlined_call_operand.hbm [shape: f32[1,1], index: 1, kind: output, shape index: {}]
  %s2 = sld [smem:[#allocation0]]
  $region45: #{rate_distortion_loss.4} parent=0
    _
  %s4 = ssub.s32 1, %s2
  %s5 = scalar_select 0, %s4, %s2
  $region1: #{rate_distortion_loss.4} parent=0
    #allocation3 [shape = 'u8[512]{0}', space=vmem, size = 0x400, scoped, tag = 'output window, operand 0, single buffered']
    #allocation4 [shape = 's32[2]{0}', space=sflag, size = 0x8, scoped, tag = 'scoped memory for rate_distortion_loss.4']
    %6 = vsyncpa [#allocation4], 0
    loop: start=0, step=1, limit=4
    $region2: #{rate_distortion_loss.4} parent=1 // loop_pre_header
      _
    $region3: #{rate_distortion_loss.4} parent=1 // loop_header
      %s8 = sphi 0, %s12
      %p9 = scmp.ge.s32.totalorder %s8, 4
      %s18 = sphi 0, %s20
      %s21 = sphi 0, %s18
      %s22 = sphi 0, %s21
      %s38 = sphi 0, %s22
      %s42 = sphi 0, %s42
      %s44 = sphi 0, %s42
      %s45 = sphi 0, %s44
      %s59 = sphi 0, %s45
    $region4: #{rate_distortion_loss.4} parent=1 // loop_header_branch
      %11 = sbr.rel (%p9) target = $region8
    $region5: #{rate_distortion_loss.4} parent=1 // loop_body
      %s13 = ssub.s32 %s8, 1
      %s14 = ssub.s32 %s8, 2
      %s15 = sadd.s32 %s8, 1
      %s16 = ssub.s32 %s8, %s15
      %p17 = scmp.eq.s32.totalorder %s16, 0
      %s19 = sadd.s32 %s18, 1
      %s20 = scalar_select %p17, %s18, %s19
      %p23 = pneg %p17
      %p24 = scmp.eq.s32.totalorder %s8, 1
      %p25 = por %p23, %p24
      %p26 = scmp.ne.s32.totalorder %s18, %s21
      %p27 = scmp.eq.s32.totalorder %s8, 0
      %p28 = por %p26, %p27
      %p29 = scmp.ne.s32.totalorder %s18, %s21
      %p30 = scmp.eq.s32.totalorder %s13, 1
      %p31 = por %p29, %p30
      %p32 = scmp.ne.s32.totalorder %s21, %s22
      %p33 = scmp.eq.s32.totalorder %s13, 0
      %p34 = por %p32, %p33
      %p35 = scmp.ne.s32.totalorder %s21, %s22
      %p36 = scmp.eq.s32.totalorder %s14, 1
      %p37 = por %p35, %p36
      %p39 = scmp.ne.s32.totalorder %s22, %s38
      %p40 = scmp.eq.s32.totalorder %s14, 0
      %p41 = por %p39, %p40
      %s43 = sadd.s32 %s42, 1
      %p46 = scmp.eq.s32.totalorder %s8, 1
      %p47 = scmp.ne.s32.totalorder %s42, %s44
      %p48 = scmp.eq.s32.totalorder %s8, 0
      %p49 = por %p47, %p48
      %p50 = scmp.ne.s32.totalorder %s42, %s44
      %p51 = scmp.eq.s32.totalorder %s13, 1
      %p52 = por %p50, %p51
      %p53 = scmp.ne.s32.totalorder %s44, %s45
      %p54 = scmp.eq.s32.totalorder %s13, 0
      %p55 = por %p53, %p54
      %p56 = scmp.ne.s32.totalorder %s44, %s45
      %p57 = scmp.eq.s32.totalorder %s14, 1
      %p58 = por %p56, %p57
      %p60 = scmp.ne.s32.totalorder %s45, %s59
      %p61 = scmp.eq.s32.totalorder %s14, 0
      %p62 = por %p60, %p61
      %p63 = scmp.le.s32.totalorder 1, %s8
      %p64 = scmp.lt.s32.totalorder %s8, 3
      %p65 = pnand %p63, %p64
      %p66 = pneg %p65
      // Predicated region
      $region9: #{rate_distortion_loss.4} parent=5 // pred_check
        _
      $region10: #{rate_distortion_loss.4} parent=5 // pred_check_branch
        %68 = sbr.rel (%p65) target = $region12
      $region11: #{rate_distortion_loss.4} parent=5 // pred_region
        %s69 = ssub.s32 %s8, 1
      $region12: #{rate_distortion_loss.4} parent=5 // pred_fallthru
        _
      %p70 = scmp.lt.s32.totalorder %s8, 2
      // Predicated region
      $region13: #{rate_distortion_loss.4} parent=5 // pred_check
        %p71 = pneg %p70
      $region14: #{rate_distortion_loss.4} parent=5 // pred_check_branch
        %73 = sbr.rel (%p71) target = $region16
      $region15: #{rate_distortion_loss.4} parent=5 // pred_region
        // Predicated region
        $region17: #{rate_distortion_loss.4} parent=15 // pred_check
          %p74 = pneg %p28
        $region18: #{rate_distortion_loss.4} parent=15 // pred_check_branch
          %76 = sbr.rel (%p74) target = $region20
        $region19: #{rate_distortion_loss.4} parent=15 // pred_region
          %s77 = smul.u32 4, %s8
          %s78 = ssub.s32 6, %s77
          %p79 = scmp.lt.s32.totalorder %s78, 4
          %s80 = scalar_select %p79, %s78, 4
          %s81 = smul.u32 128, %s80
          %p82 = scmp.lt.s32.totalorder %s77, 5
          %s83 = scalar_select %p82, %s77, 5
          %s84 = smul.addr %s83, 8
          %s85 = scalar_lea.vmem %s0, %s84
          %s86 = smul.u32 4, %s8
          %s87 = ssub.s32 6, %s86
          %p88 = scmp.lt.s32.totalorder %s87, 4
          %s89 = scalar_select %p88, %s87, 4
          %s90 = smul.u32 128, %s89
        $region20: #{rate_distortion_loss.4} parent=15 // pred_fallthru
          _
      $region16: #{rate_distortion_loss.4} parent=5 // pred_fallthru
        _
      %p91 = scmp.le.s32.totalorder 1, %s8
      %p92 = scmp.lt.s32.totalorder %s8, 3
      %p93 = pnand %p91, %p92
      %p94 = pneg %p93
      // Predicated region
      $region21: #{rate_distortion_loss.4} parent=5 // pred_check
        _
      $region22: #{rate_distortion_loss.4} parent=5 // pred_check_branch
        %96 = sbr.rel (%p93) target = $region24
      $region23: #{rate_distortion_loss.4} parent=5 // pred_region
        %s97 = ssub.s32 %s8, 1
        %s98 = smul.u32 4, %s13
        %s99 = ssub.s32 6, %s98
        %p100 = scmp.lt.s32.totalorder %s99, 4
        %s101 = scalar_select %p100, %s99, 4
        %s102 = smul.u32 128, %s101
        %p103 = scmp.lt.s32.totalorder %s98, 5
        %s104 = scalar_select %p103, %s98, 5
        %s105 = smul.addr %s104, 8
        %s106 = scalar_lea.vmem %s0, %s105
        %p107 = pneg %p34
        %p108 = pneg %p31
        %p109 = pneg %p55
        %p110 = pneg %p52
        %s111 = smul.u32 4, %s13
        %s112 = ssub.s32 6, %s111
        %p113 = scmp.lt.s32.totalorder %s112, 4
        %s114 = scalar_select %p113, %s112, 4
        %s115 = smul.u32 128, %s114
        %p116 = scmp.lt.s32.totalorder %s111, 5
        %s117 = scalar_select %p116, %s111, 5
        %s118 = smul.addr %s117, 8
        %s119 = scalar_lea.vmem %s0, %s118
        %s120 = smul.u32 4, %s13
        %s121 = ssub.s32 6, %s120
        %p122 = scmp.lt.s32.totalorder %s121, 4
        %s123 = scalar_select %p122, %s121, 4
        %s124 = smul.u32 128, %s123
        %p125 = scmp.eq.s32.totalorder %s13, 0
        // Predicated region
        $region25: #{rate_distortion_loss.4} parent=23 // pred_check
          %p126 = pneg %p125
        $region26: #{rate_distortion_loss.4} parent=23 // pred_check_branch
          %128 = sbr.rel (%p126) target = $region28
        $region27: #{rate_distortion_loss.4} parent=23 // pred_region
          %129 = vst [vmem:[#allocation2] sm:$0xff] 0.0
          %130 = vst [vmem:[#allocation2 + $0x8] sm:$0xff] 0.0
          %131 = vst [vmem:[#allocation2 + $0x10] sm:$0xff] 0.0
          %132 = vst [vmem:[#allocation2 + $0x18] sm:$0xff] 0.0
        $region28: #{rate_distortion_loss.4} parent=23 // pred_fallthru
          _
        %v133 = vld [vmem:[%s119] sm:$0xff]
        %v134 = vld [vmem:[%s119 + $0x8] sm:$0xff]
        %v135 = vld [vmem:[%s119 + $0x10] sm:$0xff]
        %v136 = vld [vmem:[%s119 + $0x18] sm:$0xff]
        %v137 = vlog2.pop %v133
        %v138 = vmul.f32 %v137, 0.6931472
        %v139 = vlog2.pop %v134
        %v140 = vmul.f32 %v139, 0.6931472
        %v141 = vlog2.pop %v135
        %v142 = vmul.f32 %v141, 0.6931472
        %v143 = vlog2.pop %v136
        %v144 = vmul.f32 %v143, 0.6931472
        %v145 = vlaneseq
        %v146 = vshrl.u32 %v145, 7
        %v147 = vadd.s32 %v146, 8
        %v148 = vadd.s32 %v146, 16
        %v149 = vadd.s32 %v146, 24
        %s150 = smul.u32 %s13, 32
        %v151 = vstv %s150
        %v152 = vadd.s32 %v151, %v146
        %v153 = vadd.s32 %v151, %v147
        %v154 = vadd.s32 %v151, %v148
        %v155 = vadd.s32 %v151, %v149
        %vm156 = vcmp.lt.s32.totalorder %v152, 48
        %vm157 = vcmp.lt.s32.totalorder %v153, 48
        %vm158 = vcmp.lt.s32.totalorder %v154, 48
        %vm159 = vcmp.lt.s32.totalorder %v155, 48
        %v160 = vsel %vm156, %v138, 0.0
        %v161 = vsel %vm157, %v140, 0.0
        %v162 = vsel %vm158, %v142, 0.0
        %v163 = vsel %vm159, %v144, 0.0
        %v164 = vld [vmem:[#allocation2] sm:$0xff]
        %v165 = vld [vmem:[#allocation2 + $0x8] sm:$0xff]
        %v166 = vld [vmem:[#allocation2 + $0x10] sm:$0xff]
        %v167 = vld [vmem:[#allocation2 + $0x18] sm:$0xff]
        %v168 = vadd.f32 %v164, %v160
        %v169 = vadd.f32 %v165, %v161
        %v170 = vadd.f32 %v166, %v162
        %v171 = vadd.f32 %v167, %v163
        %172 = vst [vmem:[#allocation2] sm:$0xff] %v168
        %173 = vst [vmem:[#allocation2 + $0x8] sm:$0xff] %v169
        %174 = vst [vmem:[#allocation2 + $0x10] sm:$0xff] %v170
        %175 = vst [vmem:[#allocation2 + $0x18] sm:$0xff] %v171
        %p176 = scmp.eq.s32.totalorder %s13, 1
        // Predicated region
        $region29: #{rate_distortion_loss.4} parent=23 // pred_check
          %p177 = pneg %p176
        $region30: #{rate_distortion_loss.4} parent=23 // pred_check_branch
          %179 = sbr.rel (%p177) target = $region32
        $region31: #{rate_distortion_loss.4} parent=23 // pred_region
          %v180 = vld [vmem:[#allocation2] sm:$0xff]
          %v181 = vld [vmem:[#allocation2 + $0x8] sm:$0xff]
          %v182 = vld [vmem:[#allocation2 + $0x10] sm:$0xff]
          %v183 = vld [vmem:[#allocation2 + $0x18] sm:$0xff]
          %v184 = vadd.f32 %v180, %v181
          %v185 = vadd.f32 %v184, %v182
          %v186 = vadd.f32 %v185, %v183
          %187 = vadd.xlane.f32.xlu0 %v186
          %v188 = vpop.xlane.xlu0 %187
          %v189 = vrot.slane %v188, 4
          %v190 = vadd.f32 %v188, %v189
          %v191 = vrot.slane %v190, 2
          %v192 = vadd.f32 %v190, %v191
          %v193 = vrot.slane %v192, 1
          %v194 = vadd.f32 %v192, %v193
          %s195 = vtos %v194
          %v196 = vstv %s195
          %vm197 = vcmask 0
          %198 = vst.msk [vmem:[#allocation3] sm:$0x1] %vm197, %v196
        $region32: #{rate_distortion_loss.4} parent=23 // pred_fallthru
          _
        // Predicated region
        $region33: #{rate_distortion_loss.4} parent=23 // pred_check
          %p199 = pneg %p52
        $region34: #{rate_distortion_loss.4} parent=23 // pred_check_branch
          %201 = sbr.rel (%p199) target = $region36
        $region35: #{rate_distortion_loss.4} parent=23 // pred_region
          %s203 = ssub.s32 16, 16
          %204 = vsyncadd [#allocation4], %s203
          %s206 = sshll.u32 [#allocation3], 4
          %s207 = int_to_ptr.vmem [resolvable:$true] %s206
          %209 = dma.vmem_to_hbm [thread:$0]  %s207, 16, %s1, [#allocation4]
        $region36: #{rate_distortion_loss.4} parent=23 // pred_fallthru
          _
        // Predicated region
        $region37: #{rate_distortion_loss.4} parent=23 // pred_check
          %p210 = pneg %p52
        $region38: #{rate_distortion_loss.4} parent=23 // pred_check_branch
          %212 = sbr.rel (%p210) target = $region40
        $region39: #{rate_distortion_loss.4} parent=23 // pred_region
          %213 = dma.done [#allocation4], 16
        $region40: #{rate_distortion_loss.4} parent=23 // pred_fallthru
          _
      $region24: #{rate_distortion_loss.4} parent=5 // pred_fallthru
        _
      %p214 = scmp.le.s32.totalorder 2, %s8
      // Predicated region
      $region41: #{rate_distortion_loss.4} parent=5 // pred_check
        %p215 = pneg %p214
      $region42: #{rate_distortion_loss.4} parent=5 // pred_check_branch
        %217 = sbr.rel (%p215) target = $region44
      $region43: #{rate_distortion_loss.4} parent=5 // pred_region
        %s218 = ssub.s32 %s8, 2
      $region44: #{rate_distortion_loss.4} parent=5 // pred_fallthru
        _
    $region6: #{rate_distortion_loss.4} parent=1 // loop_footer
      %s12 = sadd.s32 1, %s8
    $region7: #{rate_distortion_loss.4} parent=1 // loop_footer_branch
      %7 = sbr.rel target = $region3
    $region8: #{rate_distortion_loss.4} parent=1 // loop_exit
      _
    %219 = vsyncpa [#allocation4], 1
    %s220 = scalar_lea.sflag [#allocation4], 1
    %221 = vsyncpa %s220, 1

// kernel: rate_distortion_loss.5
$region0: #{rate_distortion_loss.5}
  #allocation0 [shape = 'u32[]', space=smem, size = 0x4, offset = 0x4, fixed_abs, tag = 'smem constant byte address 0x4 - core index']
  #allocation1 [shape = 'u32[144,128]{1,0:T(1,128)}', space=vmem, size = 0x12000, scoped, tag = 'internal scratch']
  #allocation2 [shape = 'f32[32,128]{1,0:T(8,128)}', space=vmem, size = 0x4000, scoped, tag = 'scratch operand']
  %s0 = inlined_call_operand.vmem [shape: f32[128,128], index: 0, kind: input, shape index: {}]
  %s1 = inlined_call_operand.hbm [shape: f32[1,1], index: 1, kind: output, shape index: {}]
  %s2 = sld [smem:[#allocation0]]
  $region45: #{rate_distortion_loss.5} parent=0
    _
  %s4 = ssub.s32 1, %s2
  %s5 = scalar_select 0, %s4, %s2
  $region1: #{rate_distortion_loss.5} parent=0
    #allocation3 [shape = 'u8[512]{0}', space=vmem, size = 0x400, scoped, tag = 'output window, operand 0, single buffered']
    #allocation4 [shape = 's32[2]{0}', space=sflag, size = 0x8, scoped, tag = 'scoped memory for rate_distortion_loss.5']
    %6 = vsyncpa [#allocation4], 0
    loop: start=0, step=1, limit=6
    $region2: #{rate_distortion_loss.5} parent=1 // loop_pre_header
      _
    $region3: #{rate_distortion_loss.5} parent=1 // loop_header
      %s8 = sphi 0, %s12
      %p9 = scmp.ge.s32.totalorder %s8, 6
      %s18 = sphi 0, %s20
      %s21 = sphi 0, %s18
      %s22 = sphi 0, %s21
      %s38 = sphi 0, %s22
      %s42 = sphi 0, %s42
      %s44 = sphi 0, %s42
      %s45 = sphi 0, %s44
      %s59 = sphi 0, %s45
    $region4: #{rate_distortion_loss.5} parent=1 // loop_header_branch
      %11 = sbr.rel (%p9) target = $region8
    $region5: #{rate_distortion_loss.5} parent=1 // loop_body
      %s13 = ssub.s32 %s8, 1
      %s14 = ssub.s32 %s8, 2
      %s15 = sadd.s32 %s8, 1
      %s16 = ssub.s32 %s8, %s15
      %p17 = scmp.eq.s32.totalorder %s16, 0
      %s19 = sadd.s32 %s18, 1
      %s20 = scalar_select %p17, %s18, %s19
      %p23 = pneg %p17
      %p24 = scmp.eq.s32.totalorder %s8, 3
      %p25 = por %p23, %p24
      %p26 = scmp.ne.s32.totalorder %s18, %s21
      %p27 = scmp.eq.s32.totalorder %s8, 0
      %p28 = por %p26, %p27
      %p29 = scmp.ne.s32.totalorder %s18, %s21
      %p30 = scmp.eq.s32.totalorder %s13, 3
      %p31 = por %p29, %p30
      %p32 = scmp.ne.s32.totalorder %s21, %s22
      %p33 = scmp.eq.s32.totalorder %s13, 0
      %p34 = por %p32, %p33
      %p35 = scmp.ne.s32.totalorder %s21, %s22
      %p36 = scmp.eq.s32.totalorder %s14, 3
      %p37 = por %p35, %p36
      %p39 = scmp.ne.s32.totalorder %s22, %s38
      %p40 = scmp.eq.s32.totalorder %s14, 0
      %p41 = por %p39, %p40
      %s43 = sadd.s32 %s42, 1
      %p46 = scmp.eq.s32.totalorder %s8, 3
      %p47 = scmp.ne.s32.totalorder %s42, %s44
      %p48 = scmp.eq.s32.totalorder %s8, 0
      %p49 = por %p47, %p48
      %p50 = scmp.ne.s32.totalorder %s42, %s44
      %p51 = scmp.eq.s32.totalorder %s13, 3
      %p52 = por %p50, %p51
      %p53 = scmp.ne.s32.totalorder %s44, %s45
      %p54 = scmp.eq.s32.totalorder %s13, 0
      %p55 = por %p53, %p54
      %p56 = scmp.ne.s32.totalorder %s44, %s45
      %p57 = scmp.eq.s32.totalorder %s14, 3
      %p58 = por %p56, %p57
      %p60 = scmp.ne.s32.totalorder %s45, %s59
      %p61 = scmp.eq.s32.totalorder %s14, 0
      %p62 = por %p60, %p61
      %p63 = scmp.le.s32.totalorder 1, %s8
      %p64 = scmp.lt.s32.totalorder %s8, 5
      %p65 = pnand %p63, %p64
      %p66 = pneg %p65
      // Predicated region
      $region9: #{rate_distortion_loss.5} parent=5 // pred_check
        _
      $region10: #{rate_distortion_loss.5} parent=5 // pred_check_branch
        %68 = sbr.rel (%p65) target = $region12
      $region11: #{rate_distortion_loss.5} parent=5 // pred_region
        %s69 = ssub.s32 %s8, 1
      $region12: #{rate_distortion_loss.5} parent=5 // pred_fallthru
        _
      %p70 = scmp.lt.s32.totalorder %s8, 4
      // Predicated region
      $region13: #{rate_distortion_loss.5} parent=5 // pred_check
        %p71 = pneg %p70
      $region14: #{rate_distortion_loss.5} parent=5 // pred_check_branch
        %73 = sbr.rel (%p71) target = $region16
      $region15: #{rate_distortion_loss.5} parent=5 // pred_region
        // Predicated region
        $region17: #{rate_distortion_loss.5} parent=15 // pred_check
          %p74 = pneg %p28
        $region18: #{rate_distortion_loss.5} parent=15 // pred_check_branch
          %76 = sbr.rel (%p74) target = $region20
        $region19: #{rate_distortion_loss.5} parent=15 // pred_region
          %s77 = smul.u32 4, %s8
          %p78 = scmp.lt.s32.totalorder %s77, 15
          %s79 = scalar_select %p78, %s77, 15
          %s80 = smul.addr %s79, 8
          %s81 = scalar_lea.vmem %s0, %s80
          %s82 = smul.u32 4, %s8
        $region20: #{rate_distortion_loss.5} parent=15 // pred_fallthru
          _
      $region16: #{rate_distortion_loss.5} parent=5 // pred_fallthru
        _
      %p83 = scmp.le.s32.totalorder 1, %s8
      %p84 = scmp.lt.s32.totalorder %s8, 5
      %p85 = pnand %p83, %p84
      %p86 = pneg %p85
      // Predicated region
      $region21: #{rate_distortion_loss.5} parent=5 // pred_check
        _
      $region22: #{rate_distortion_loss.5} parent=5 // pred_check_branch
        %88 = sbr.rel (%p85) target = $region24
      $region23: #{rate_distortion_loss.5} parent=5 // pred_region
        %s89 = ssub.s32 %s8, 1
        %s90 = smul.u32 4, %s13
        %p91 = scmp.lt.s32.totalorder %s90, 15
        %s92 = scalar_select %p91, %s90, 15
        %s93 = smul.addr %s92, 8
        %s94 = scalar_lea.vmem %s0, %s93
        %p95 = pneg %p34
        %p96 = pneg %p31
        %p97 = pneg %p55
        %p98 = pneg %p52
        %s99 = smul.u32 4, %s13
        %p100 = scmp.lt.s32.totalorder %s99, 15
        %s101 = scalar_select %p100, %s99, 15
        %s102 = smul.addr %s101, 8
        %s103 = scalar_lea.vmem %s0, %s102
        %s104 = smul.u32 4, %s13
        %p105 = scmp.eq.s32.totalorder %s13, 0
        // Predicated region
        $region25: #{rate_distortion_loss.5} parent=23 // pred_check
          %p106 = pneg %p105
        $region26: #{rate_distortion_loss.5} parent=23 // pred_check_branch
          %108 = sbr.rel (%p106) target = $region28
        $region27: #{rate_distortion_loss.5} parent=23 // pred_region
          %109 = vst [vmem:[#allocation2] sm:$0xff] 0.0
          %110 = vst [vmem:[#allocation2 + $0x8] sm:$0xff] 0.0
          %111 = vst [vmem:[#allocation2 + $0x10] sm:$0xff] 0.0
          %112 = vst [vmem:[#allocation2 + $0x18] sm:$0xff] 0.0
        $region28: #{rate_distortion_loss.5} parent=23 // pred_fallthru
          _
        %v113 = vld [vmem:[%s103] sm:$0xff]
        %v114 = vld [vmem:[%s103 + $0x8] sm:$0xff]
        %v115 = vld [vmem:[%s103 + $0x10] sm:$0xff]
        %v116 = vld [vmem:[%s103 + $0x18] sm:$0xff]
        %v117 = vlog2.pop %v113
        %v118 = vmul.f32 %v117, 0.6931472
        %v119 = vlog2.pop %v114
        %v120 = vmul.f32 %v119, 0.6931472
        %v121 = vlog2.pop %v115
        %v122 = vmul.f32 %v121, 0.6931472
        %v123 = vlog2.pop %v116
        %v124 = vmul.f32 %v123, 0.6931472
        %v125 = vld [vmem:[#allocation2] sm:$0xff]
        %v126 = vld [vmem:[#allocation2 + $0x8] sm:$0xff]
        %v127 = vld [vmem:[#allocation2 + $0x10] sm:$0xff]
        %v128 = vld [vmem:[#allocation2 + $0x18] sm:$0xff]
        %v129 = vadd.f32 %v125, %v118
        %v130 = vadd.f32 %v126, %v120
        %v131 = vadd.f32 %v127, %v122
        %v132 = vadd.f32 %v128, %v124
        %133 = vst [vmem:[#allocation2] sm:$0xff] %v129
        %134 = vst [vmem:[#allocation2 + $0x8] sm:$0xff] %v130
        %135 = vst [vmem:[#allocation2 + $0x10] sm:$0xff] %v131
        %136 = vst [vmem:[#allocation2 + $0x18] sm:$0xff] %v132
        %p137 = scmp.eq.s32.totalorder %s13, 3
        // Predicated region
        $region29: #{rate_distortion_loss.5} parent=23 // pred_check
          %p138 = pneg %p137
        $region30: #{rate_distortion_loss.5} parent=23 // pred_check_branch
          %140 = sbr.rel (%p138) target = $region32
        $region31: #{rate_distortion_loss.5} parent=23 // pred_region
          %v141 = vld [vmem:[#allocation2] sm:$0xff]
          %v142 = vld [vmem:[#allocation2 + $0x8] sm:$0xff]
          %v143 = vld [vmem:[#allocation2 + $0x10] sm:$0xff]
          %v144 = vld [vmem:[#allocation2 + $0x18] sm:$0xff]
          %v145 = vadd.f32 %v141, %v142
          %v146 = vadd.f32 %v145, %v143
          %v147 = vadd.f32 %v146, %v144
          %148 = vadd.xlane.f32.xlu0 %v147
          %v149 = vpop.xlane.xlu0 %148
          %v150 = vrot.slane %v149, 4
          %v151 = vadd.f32 %v149, %v150
          %v152 = vrot.slane %v151, 2
          %v153 = vadd.f32 %v151, %v152
          %v154 = vrot.slane %v153, 1
          %v155 = vadd.f32 %v153, %v154
          %s156 = vtos %v155
          %v157 = vstv %s156
          %vm158 = vcmask 0
          %159 = vst.msk [vmem:[#allocation3] sm:$0x1] %vm158, %v157
        $region32: #{rate_distortion_loss.5} parent=23 // pred_fallthru
          _
        // Predicated region
        $region33: #{rate_distortion_loss.5} parent=23 // pred_check
          %p160 = pneg %p52
        $region34: #{rate_distortion_loss.5} parent=23 // pred_check_branch
          %162 = sbr.rel (%p160) target = $region36
        $region35: #{rate_distortion_loss.5} parent=23 // pred_region
          %s164 = ssub.s32 16, 16
          %165 = vsyncadd [#allocation4], %s164
          %s167 = sshll.u32 [#allocation3], 4
          %s168 = int_to_ptr.vmem [resolvable:$true] %s167
          %170 = dma.vmem_to_hbm [thread:$0]  %s168, 16, %s1, [#allocation4]
        $region36: #{rate_distortion_loss.5} parent=23 // pred_fallthru
          _
        // Predicated region
        $region37: #{rate_distortion_loss.5} parent=23 // pred_check
          %p171 = pneg %p52
        $region38: #{rate_distortion_loss.5} parent=23 // pred_check_branch
          %173 = sbr.rel (%p171) target = $region40
        $region39: #{rate_distortion_loss.5} parent=23 // pred_region
          %174 = dma.done [#allocation4], 16
        $region40: #{rate_distortion_loss.5} parent=23 // pred_fallthru
          _
      $region24: #{rate_distortion_loss.5} parent=5 // pred_fallthru
        _
      %p175 = scmp.le.s32.totalorder 2, %s8
      // Predicated region
      $region41: #{rate_distortion_loss.5} parent=5 // pred_check
        %p176 = pneg %p175
      $region42: #{rate_distortion_loss.5} parent=5 // pred_check_branch
        %178 = sbr.rel (%p176) target = $region44
      $region43: #{rate_distortion_loss.5} parent=5 // pred_region
        %s179 = ssub.s32 %s8, 2
      $region44: #{rate_distortion_loss.5} parent=5 // pred_fallthru
        _
    $region6: #{rate_distortion_loss.5} parent=1 // loop_footer
      %s12 = sadd.s32 1, %s8
    $region7: #{rate_distortion_loss.5} parent=1 // loop_footer_branch
      %7 = sbr.rel target = $region3
    $region8: #{rate_distortion_loss.5} parent=1 // loop_exit
      _
    %180 = vsyncpa [#allocation4], 1
    %s181 = scalar_lea.sflag [#allocation4], 1
    %182 = vsyncpa %s181, 1

// kernel: rate_distortion_loss.3
$region0: #{rate_distortion_loss.3}
  #allocation0 [shape = 'u32[]', space=smem, size = 0x4, offset = 0x4, fixed_abs, tag = 'smem constant byte address 0x4 - core index']
  #allocation1 [shape = 'u32[144,128]{1,0:T(1,128)}', space=vmem, size = 0x12000, scoped, tag = 'internal scratch']
  #allocation2 [shape = 'f32[24,128]{1,0:T(8,128)}', space=vmem, size = 0x3000, scoped, tag = 'scratch operand']
  #allocation3 [shape = 'f32[24,128]{1,0:T(8,128)}', space=vmem, size = 0x3000, scoped, tag = 'scratch operand']
  %s0 = inlined_call_operand.vmem [shape: f32[2,3,32,128], index: 0, kind: input, shape index: {}]
  %s1 = inlined_call_operand.vmem [shape: f32[2,3,32,128], index: 1, kind: input, shape index: {}]
  %s2 = inlined_call_operand.vmem [shape: f32[2,1,32,128], index: 2, kind: input, shape index: {}]
  %s3 = inlined_call_operand.vmem [shape: f32[2,1,1], index: 3, kind: output, shape index: {0}]
  %s4 = inlined_call_operand.vmem [shape: f32[2,1,1], index: 4, kind: output, shape index: {1}]
  %5 = xla_tuple %s3, %s4
  %s6 = sld [smem:[#allocation0]]
  $region165: #{rate_distortion_loss.3} parent=0
    _
  %s8 = ssub.s32 1, %s6
  %s9 = scalar_select 0, %s8, %s6
  $region1: #{rate_distortion_loss.3} parent=0
    #allocation4 [shape = 'u8[73728]{0}', space=vmem, size = 0x12000, scoped, tag = 'input window, operand 0']
    #allocation5 [shape = 'u8[73728]{0}', space=vmem, size = 0x12000, scoped, tag = 'input window, operand 1']
    loop: start=0, step=1, limit=6
    $region2: #{rate_distortion_loss.3} parent=1 // loop_pre_header
      _
    $region3: #{rate_distortion_loss.3} parent=1 // loop_header
      %s11 = sphi 0, %s15
      %p12 = scmp.ge.s32.totalorder %s11, 6
      %s18 = sphi 0, %s30
      %s19 = sphi 0, %s26
      %s20 = sphi 0, %s18
      %s21 = sphi 0, %s19
      %s22 = sphi 0, %s20
      %s23 = sphi 0, %s21
      %s35 = sphi 0, %s37
      %s38 = sphi 0, %s35
      %s39 = sphi 0, %s38
      %s55 = sphi 0, %s39
      %s63 = sphi 0, %s65
      %s66 = sphi 0, %s63
      %s67 = sphi 0, %s66
      %s83 = sphi 0, %s67
      %s91 = sphi 0, %s93
      %s94 = sphi 0, %s91
      %s95 = sphi 0, %s94
      %s111 = sphi 0, %s95
      %s117 = sphi 0, %s119
      %s120 = sphi 0, %s117
      %s121 = sphi 0, %s120
      %s137 = sphi 0, %s121
      %s143 = sphi 0, %s145
      %s146 = sphi 0, %s143
      %s147 = sphi 0, %s146
      %s163 = sphi 0, %s147
    $region4: #{rate_distortion_loss.3} parent=1 // loop_header_branch
      %14 = sbr.rel (%p12) target = $region8
    $region5: #{rate_distortion_loss.3} parent=1 // loop_body
      %s16 = ssub.s32 %s11, 1
      %s17 = ssub.s32 %s11, 2
      %s24 = sadd.s32 1, %s19
      %p25 = scmp.ge.s32.totalorder %s24, 2
      %s26 = scalar_select %p25, 0, %s24
      %s27 = sadd.s32 1, %s18
      %s28 = scalar_select %p25, %s27, %s18
      %p29 = scmp.ge.s32.totalorder %s28, 2
      %s30 = scalar_select %p29, 0, %s28
      %s31 = ssub.s32 %s18, %s30
      %s32 = ssub.s32 %s19, %s26
      %s33 = sor.u32 %s31, %s32
      %p34 = scmp.eq.s32.totalorder %s33, 0
      %s36 = sadd.s32 %s35, 1
      %s37 = scalar_select %p34, %s35, %s36
      %p40 = pneg %p34
      %p41 = scmp.eq.s32.totalorder %s11, 3
      %p42 = por %p40, %p41
      %p43 = scmp.ne.s32.totalorder %s35, %s38
      %p44 = scmp.eq.s32.totalorder %s11, 0
      %p45 = por %p43, %p44
      %p46 = scmp.ne.s32.totalorder %s35, %s38
      %p47 = scmp.eq.s32.totalorder %s16, 3
      %p48 = por %p46, %p47
      %p49 = scmp.ne.s32.totalorder %s38, %s39
      %p50 = scmp.eq.s32.totalorder %s16, 0
      %p51 = por %p49, %p50
      %p52 = scmp.ne.s32.totalorder %s38, %s39
      %p53 = scmp.eq.s32.totalorder %s17, 3
      %p54 = por %p52, %p53
      %p56 = scmp.ne.s32.totalorder %s39, %s55
      %p57 = scmp.eq.s32.totalorder %s17, 0
      %p58 = por %p56, %p57
      %s59 = ssub.s32 %s18, %s30
      %s60 = ssub.s32 %s19, %s26
      %s61 = sor.u32 %s59, %s60
      %p62 = scmp.eq.s32.totalorder %s61, 0
      %s64 = sadd.s32 %s63, 1
      %s65 = scalar_select %p62, %s63, %s64
      %p68 = pneg %p62
      %p69 = scmp.eq.s32.totalorder %s11, 3
      %p70 = por %p68, %p69
      %p71 = scmp.ne.s32.totalorder %s63, %s66
      %p72 = scmp.eq.s32.totalorder %s11, 0
      %p73 = por %p71, %p72
      %p74 = scmp.ne.s32.totalorder %s63, %s66
      %p75 = scmp.eq.s32.totalorder %s16, 3
      %p76 = por %p74, %p75
      %p77 = scmp.ne.s32.totalorder %s66, %s67
      %p78 = scmp.eq.s32.totalorder %s16, 0
      %p79 = por %p77, %p78
      %p80 = scmp.ne.s32.totalorder %s66, %s67
      %p81 = scmp.eq.s32.totalorder %s17, 3
      %p82 = por %p80, %p81
      %p84 = scmp.ne.s32.totalorder %s67, %s83
      %p85 = scmp.eq.s32.totalorder %s17, 0
      %p86 = por %p84, %p85
      %s87 = ssub.s32 %s18, %s30
      %s88 = ssub.s32 %s19, %s26
      %s89 = sor.u32 %s87, %s88
      %p90 = scmp.eq.s32.totalorder %s89, 0
      %s92 = sadd.s32 %s91, 1
      %s93 = scalar_select %p90, %s91, %s92
      %p96 = pneg %p90
      %p97 = scmp.eq.s32.totalorder %s11, 3
      %p98 = por %p96, %p97
      %p99 = scmp.ne.s32.totalorder %s91, %s94
      %p100 = scmp.eq.s32.totalorder %s11, 0
      %p101 = por %p99, %p100
      %p102 = scmp.ne.s32.totalorder %s91, %s94
      %p103 = scmp.eq.s32.totalorder %s16, 3
      %p104 = por %p102, %p103
      %p105 = scmp.ne.s32.totalorder %s94, %s95
      %p106 = scmp.eq.s32.totalorder %s16, 0
      %p107 = por %p105, %p106
      %p108 = scmp.ne.s32.totalorder %s94, %s95
      %p109 = scmp.eq.s32.totalorder %s17, 3
      %p110 = por %p108, %p109
      %p112 = scmp.ne.s32.totalorder %s95, %s111
      %p113 = scmp.eq.s32.totalorder %s17, 0
      %p114 = por %p112, %p113
      %s115 = ssub.s32 %s18, %s30
      %p116 = scmp.eq.s32.totalorder %s115, 0
      %s118 = sadd.s32 %s117, 1
      %s119 = scalar_select %p116, %s117, %s118
      %p122 = pneg %p116
      %p123 = scmp.eq.s32.totalorder %s11, 3
      %p124 = por %p122, %p123
      %p125 = scmp.ne.s32.totalorder %s117, %s120
      %p126 = scmp.eq.s32.totalorder %s11, 0
      %p127 = por %p125, %p126
      %p128 = scmp.ne.s32.totalorder %s117, %s120
      %p129 = scmp.eq.s32.totalorder %s16, 3
      %p130 = por %p128, %p129
      %p131 = scmp.ne.s32.totalorder %s120, %s121
      %p132 = scmp.eq.s32.totalorder %s16, 0
      %p133 = por %p131, %p132
      %p134 = scmp.ne.s32.totalorder %s120, %s121
      %p135 = scmp.eq.s32.totalorder %s17, 3
      %p136 = por %p134, %p135
      %p138 = scmp.ne.s32.totalorder %s121, %s137
      %p139 = scmp.eq.s32.totalorder %s17, 0
      %p140 = por %p138, %p139
      %s141 = ssub.s32 %s18, %s30
      %p142 = scmp.eq.s32.totalorder %s141, 0
      %s144 = sadd.s32 %s143, 1
      %s145 = scalar_select %p142, %s143, %s144
      %p148 = pneg %p142
      %p149 = scmp.eq.s32.totalorder %s11, 3
      %p150 = por %p148, %p149
      %p151 = scmp.ne.s32.totalorder %s143, %s146
      %p152 = scmp.eq.s32.totalorder %s11, 0
      %p153 = por %p151, %p152
      %p154 = scmp.ne.s32.totalorder %s143, %s146
      %p155 = scmp.eq.s32.totalorder %s16, 3
      %p156 = por %p154, %p155
      %p157 = scmp.ne.s32.totalorder %s146, %s147
      %p158 = scmp.eq.s32.totalorder %s16, 0
      %p159 = por %p157, %p158
      %p160 = scmp.ne.s32.totalorder %s146, %s147
      %p161 = scmp.eq.s32.totalorder %s17, 3
      %p162 = por %p160, %p161
      %p164 = scmp.ne.s32.totalorder %s147, %s163
      %p165 = scmp.eq.s32.totalorder %s17, 0
      %p166 = por %p164, %p165
      %p167 = scmp.le.s32.totalorder 1, %s11
      %p168 = scmp.lt.s32.totalorder %s11, 5
      %p169 = pnand %p167, %p168
      %p170 = pneg %p169
      // Predicated region
      $region9: #{rate_distortion_loss.3} parent=5 // pred_check
        _
      $region10: #{rate_distortion_loss.3} parent=5 // pred_check_branch
        %172 = sbr.rel (%p169) target = $region12
      $region11: #{rate_distortion_loss.3} parent=5 // pred_region
        %s173 = ssub.s32 %s11, 1
      $region12: #{rate_distortion_loss.3} parent=5 // pred_fallthru
        _
      %p174 = scmp.lt.s32.totalorder %s11, 4
      // Predicated region
      $region13: #{rate_distortion_loss.3} parent=5 // pred_check
        %p175 = pneg %p174
      $region14: #{rate_distortion_loss.3} parent=5 // pred_check_branch
        %177 = sbr.rel (%p175) target = $region16
      $region15: #{rate_distortion_loss.3} parent=5 // pred_region
        // Predicated region
        $region17: #{rate_distortion_loss.3} parent=15 // pred_check
          %p178 = pneg %p45
        $region18: #{rate_distortion_loss.3} parent=15 // pred_check_branch
          %180 = sbr.rel (%p178) target = $region20
        $region19: #{rate_distortion_loss.3} parent=15 // pred_region
          %s181 = sand.u32 %s35, 1
          %s182 = sand.u32 %s35, 1
          %s183 = smul.addr %s182, 72
          %s184 = scalar_lea.vmem [#allocation4], %s183
          %s185 = smul.u32 3, %s19
          %s186 = ssub.s32 4, %s185
          %p187 = scmp.lt.s32.totalorder %s186, 3
          %s188 = scalar_select %p187, %s186, 3
          %s189 = smul.u32 384, %s188
          %p190 = scmp.ne.s32.totalorder 0, %s189
          %s191 = smul.addr %s18, 12
          %s192 = sadd.s32 %s185, %s191
          %s193 = smul.addr %s192, 8
          %s194 = scalar_lea.vmem %s0, %s193
          // Predicated region
          $region21: #{rate_distortion_loss.3} parent=19 // pred_check
            %p195 = pneg %p190
          $region22: #{rate_distortion_loss.3} parent=19 // pred_check_branch
            %197 = sbr.rel (%p195) target = $region24
          $region23: #{rate_distortion_loss.3} parent=19 // pred_region
            // Predicated region
            $region25: #{rate_distortion_loss.3} parent=23 // pred_check
              _
            $region26: #{rate_distortion_loss.3} parent=23 // pred_check_branch
              %199 = sbr.rel (0) target = $region28
            $region27: #{rate_distortion_loss.3} parent=23 // pred_region
              // Predicated region
              $region47: #{rate_distortion_loss.3} parent=27 // pred_check
                _
              $region48: #{rate_distortion_loss.3} parent=27 // pred_check_branch
                %270 = sbr.rel (0) target = $region50
              $region49: #{rate_distortion_loss.3} parent=27 // pred_region
                %s271 = sdiv.u32.pop %s188, 3
                %s272 = srem.u32.pop %s188, 3
                // While loop
                $region51: #{rate_distortion_loss.3} parent=49 // loop_pre_header
                  _
                $region52: #{rate_distortion_loss.3} parent=49 // loop_header
                  %s274 = sphi 0, %s276
                  %p275 = scmp.ge.s32.totalorder %s274, %s271
                  %s279 = sphi 0, %s302
                  %s280 = sphi %s194, %s305
                  %s281 = sphi %s184, %s306
                $region53: #{rate_distortion_loss.3} parent=49 // loop_header_branch
                  %278 = sbr.rel (%p275) target = $region57
                $region54: #{rate_distortion_loss.3} parent=49 // loop_body
                  %v282 = vld [vmem:[%s280] sm:$0xff]
                  %283 = vst [vmem:[%s281] sm:$0xff] %v282
                  %v284 = vld [vmem:[%s280 + $0x8] sm:$0xff]
                  %285 = vst [vmem:[%s281 + $0x8] sm:$0xff] %v284
                  %v286 = vld [vmem:[%s280 + $0x10] sm:$0xff]
                  %287 = vst [vmem:[%s281 + $0x10] sm:$0xff] %v286
                  %v288 = vld [vmem:[%s280 + $0x20] sm:$0xff]
                  %289 = vst [vmem:[%s281 + $0x18] sm:$0xff] %v288
                  %v290 = vld [vmem:[%s280 + $0x28] sm:$0xff]
                  %291 = vst [vmem:[%s281 + $0x20] sm:$0xff] %v290
                  %v292 = vld [vmem:[%s280 + $0x30] sm:$0xff]
                  %293 = vst [vmem:[%s281 + $0x28] sm:$0xff] %v292
                  %v294 = vld [vmem:[%s280 + $0x40] sm:$0xff]
                  %295 = vst [vmem:[%s281 + $0x30] sm:$0xff] %v294
                  %v296 = vld [vmem:[%s280 + $0x48] sm:$0xff]
                  %297 = vst [vmem:[%s281 + $0x38] sm:$0xff] %v296
                  %v298 = vld [vmem:[%s280 + $0x50] sm:$0xff]
                  %299 = vst [vmem:[%s281 + $0x40] sm:$0xff] %v298
                  %s300 = sadd.s32 1, %s279
                  %p301 = scmp.ge.s32.totalorder %s300, %s271
                  %s302 = scalar_select %p301, 0, %s300
                  %s303 = smul.u32 %s302, 24
                  %s304 = smul.u32 %s302, 24
                  %s305 = scalar_lea.vmem %s194, %s303
                  %s306 = scalar_lea.vmem %s184, %s304 [#allocation4]
                $region55: #{rate_distortion_loss.3} parent=49 // loop_footer
                  %s276 = sadd.s32 %s274, 1
                $region56: #{rate_distortion_loss.3} parent=49 // loop_footer_branch
                  %273 = sbr.rel target = $region52
                $region57: #{rate_distortion_loss.3} parent=49 // loop_exit
                  _
                %s307 = sdiv.u32.pop %s188, 3
                %s308 = srem.u32.pop %s188, 3
                %s309 = smul.u32 %s307, 3
                %s310 = smul.u32 8, %s309
                %s311 = scalar_lea.vmem %s194, %s310
                %s312 = smul.u32 8, %s309
                %s313 = scalar_lea.vmem %s184, %s312 [#allocation4]
                // While loop
                $region58: #{rate_distortion_loss.3} parent=49 // loop_pre_header
                  _
                $region59: #{rate_distortion_loss.3} parent=49 // loop_header
                  %s315 = sphi 0, %s317
                  %p316 = scmp.ge.s32.totalorder %s315, %s308
                  %s320 = sphi 0, %s331
                  %s321 = sphi %s311, %s334
                  %s322 = sphi %s313, %s335
                $region60: #{rate_distortion_loss.3} parent=49 // loop_header_branch
                  %319 = sbr.rel (%p316) target = $region64
                $region61: #{rate_distortion_loss.3} parent=49 // loop_body
                  %v323 = vld [vmem:[%s321] sm:$0xff]
                  %324 = vst [vmem:[%s322] sm:$0xff] %v323
                  %v325 = vld [vmem:[%s321 + $0x20] sm:$0xff]
                  %326 = vst [vmem:[%s322 + $0x18] sm:$0xff] %v325
                  %v327 = vld [vmem:[%s321 + $0x40] sm:$0xff]
                  %328 = vst [vmem:[%s322 + $0x30] sm:$0xff] %v327
                  %s329 = sadd.s32 1, %s320
                  %p330 = scmp.ge.s32.totalorder %s329, %s308
                  %s331 = scalar_select %p330, 0, %s329
                  %s332 = smul.u32 %s331, 8
                  %s333 = smul.u32 %s331, 8
                  %s334 = scalar_lea.vmem %s311, %s332
                  %s335 = scalar_lea.vmem %s313, %s333 [#allocation4]
                $region62: #{rate_distortion_loss.3} parent=49 // loop_footer
                  %s317 = sadd.s32 %s315, 1
                $region63: #{rate_distortion_loss.3} parent=49 // loop_footer_branch
                  %314 = sbr.rel target = $region59
                $region64: #{rate_distortion_loss.3} parent=49 // loop_exit
                  _
              $region50: #{rate_distortion_loss.3} parent=27 // pred_fallthru
                _
              // Predicated region
              $region65: #{rate_distortion_loss.3} parent=27 // pred_check
                _
              $region66: #{rate_distortion_loss.3} parent=27 // pred_check_branch
                %337 = sbr.rel target = $region68
              $region67: #{rate_distortion_loss.3} parent=27 // pred_region
                _
              $region68: #{rate_distortion_loss.3} parent=27 // pred_fallthru
                _
            $region28: #{rate_distortion_loss.3} parent=23 // pred_fallthru
              _
            // Predicated region
            $region29: #{rate_distortion_loss.3} parent=23 // pred_check
              _
            $region30: #{rate_distortion_loss.3} parent=23 // pred_check_branch
              %201 = sbr.rel target = $region32
            $region31: #{rate_distortion_loss.3} parent=23 // pred_region
              %s203 = ssub.s32 256, 1
              %s204 = sdiv.u32.pop %s188, 3
              %s205 = srem.u32.pop %s188, 3
              // While loop
              $region33: #{rate_distortion_loss.3} parent=31 // loop_pre_header
                _
              $region34: #{rate_distortion_loss.3} parent=31 // loop_header
                %s207 = sphi 0, %s209
                %p208 = scmp.ge.s32.totalorder %s207, %s204
                %s212 = sphi 0, %s235
                %s213 = sphi %s194, %s238
                %s214 = sphi %s184, %s239
              $region35: #{rate_distortion_loss.3} parent=31 // loop_header_branch
                %211 = sbr.rel (%p208) target = $region39
              $region36: #{rate_distortion_loss.3} parent=31 // loop_body
                %v215 = vld [vmem:[%s213] sm:%s203]
                %216 = vst [vmem:[%s214] sm:%s203] %v215
                %v217 = vld [vmem:[%s213 + $0x8] sm:%s203]
                %218 = vst [vmem:[%s214 + $0x8] sm:%s203] %v217
                %v219 = vld [vmem:[%s213 + $0x10] sm:%s203]
                %220 = vst [vmem:[%s214 + $0x10] sm:%s203] %v219
                %v221 = vld [vmem:[%s213 + $0x20] sm:%s203]
                %222 = vst [vmem:[%s214 + $0x18] sm:%s203] %v221
                %v223 = vld [vmem:[%s213 + $0x28] sm:%s203]
                %224 = vst [vmem:[%s214 + $0x20] sm:%s203] %v223
                %v225 = vld [vmem:[%s213 + $0x30] sm:%s203]
                %226 = vst [vmem:[%s214 + $0x28] sm:%s203] %v225
                %v227 = vld [vmem:[%s213 + $0x40] sm:%s203]
                %228 = vst [vmem:[%s214 + $0x30] sm:%s203] %v227
                %v229 = vld [vmem:[%s213 + $0x48] sm:%s203]
                %230 = vst [vmem:[%s214 + $0x38] sm:%s203] %v229
                %v231 = vld [vmem:[%s213 + $0x50] sm:%s203]
                %232 = vst [vmem:[%s214 + $0x40] sm:%s203] %v231
                %s233 = sadd.s32 1, %s212
                %p234 = scmp.ge.s32.totalorder %s233, %s204
                %s235 = scalar_select %p234, 0, %s233
                %s236 = smul.u32 %s235, 24
                %s237 = smul.u32 %s235, 24
                %s238 = scalar_lea.vmem %s194, %s236
                %s239 = scalar_lea.vmem %s184, %s237 [#allocation4]
              $region37: #{rate_distortion_loss.3} parent=31 // loop_footer
                %s209 = sadd.s32 %s207, 1
              $region38: #{rate_distortion_loss.3} parent=31 // loop_footer_branch
                %206 = sbr.rel target = $region34
              $region39: #{rate_distortion_loss.3} parent=31 // loop_exit
                _
              %s240 = sdiv.u32.pop %s188, 3
              %s241 = srem.u32.pop %s188, 3
              %s242 = smul.u32 %s240, 3
              %s243 = smul.u32 8, %s242
              %s244 = scalar_lea.vmem %s194, %s243
              %s245 = smul.u32 8, %s242
              %s246 = scalar_lea.vmem %s184, %s245 [#allocation4]
              // While loop
              $region40: #{rate_distortion_loss.3} parent=31 // loop_pre_header
                _
              $region41: #{rate_distortion_loss.3} parent=31 // loop_header
                %s248 = sphi 0, %s250
                %p249 = scmp.ge.s32.totalorder %s248, %s241
                %s253 = sphi 0, %s264
                %s254 = sphi %s244, %s267
                %s255 = sphi %s246, %s268
              $region42: #{rate_distortion_loss.3} parent=31 // loop_header_branch
                %252 = sbr.rel (%p249) target = $region46
              $region43: #{rate_distortion_loss.3} parent=31 // loop_body
                %v256 = vld [vmem:[%s254] sm:%s203]
                %257 = vst [vmem:[%s255] sm:%s203] %v256
                %v258 = vld [vmem:[%s254 + $0x20] sm:%s203]
                %259 = vst [vmem:[%s255 + $0x18] sm:%s203] %v258
                %v260 = vld [vmem:[%s254 + $0x40] sm:%s203]
                %261 = vst [vmem:[%s255 + $0x30] sm:%s203] %v260
                %s262 = sadd.s32 1, %s253
                %p263 = scmp.ge.s32.totalorder %s262, %s241
                %s264 = scalar_select %p263, 0, %s262
                %s265 = smul.u32 %s264, 8
                %s266 = smul.u32 %s264, 8
                %s267 = scalar_lea.vmem %s244, %s265
                %s268 = scalar_lea.vmem %s246, %s266 [#allocation4]
              $region44: #{rate_distortion_loss.3} parent=31 // loop_footer
                %s250 = sadd.s32 %s248, 1
              $region45: #{rate_distortion_loss.3} parent=31 // loop_footer_branch
                %247 = sbr.rel target = $region41
              $region46: #{rate_distortion_loss.3} parent=31 // loop_exit
                _
            $region32: #{rate_distortion_loss.3} parent=23 // pred_fallthru
              _
          $region24: #{rate_distortion_loss.3} parent=19 // pred_fallthru
            _
          %338 = vnop
        $region20: #{rate_distortion_loss.3} parent=15 // pred_fallthru
          _
        // Predicated region
        $region69: #{rate_distortion_loss.3} parent=15 // pred_check
          %p339 = pneg %p73
        $region70: #{rate_distortion_loss.3} parent=15 // pred_check_branch
          %341 = sbr.rel (%p339) target = $region72
        $region71: #{rate_distortion_loss.3} parent=15 // pred_region
          %s342 = sand.u32 %s63, 1
          %s343 = sand.u32 %s63, 1
          %s344 = smul.addr %s343, 72
          %s345 = scalar_lea.vmem [#allocation5], %s344
          %s346 = smul.u32 3, %s19
          %s347 = ssub.s32 4, %s346
          %p348 = scmp.lt.s32.totalorder %s347, 3
          %s349 = scalar_select %p348, %s347, 3
          %s350 = smul.u32 384, %s349
          %p351 = scmp.ne.s32.totalorder 0, %s350
          %s352 = smul.addr %s18, 12
          %s353 = sadd.s32 %s346, %s352
          %s354 = smul.addr %s353, 8
          %s355 = scalar_lea.vmem %s1, %s354
          // Predicated region
          $region73: #{rate_distortion_loss.3} parent=71 // pred_check
            %p356 = pneg %p351
          $region74: #{rate_distortion_loss.3} parent=71 // pred_check_branch
            %358 = sbr.rel (%p356) target = $region76
          $region75: #{rate_distortion_loss.3} parent=71 // pred_region
            // Predicated region
            $region77: #{rate_distortion_loss.3} parent=75 // pred_check
              _
            $region78: #{rate_distortion_loss.3} parent=75 // pred_check_branch
              %360 = sbr.rel (0) target = $region80
            $region79: #{rate_distortion_loss.3} parent=75 // pred_region
              // Predicated region
              $region99: #{rate_distortion_loss.3} parent=79 // pred_check
                _
              $region100: #{rate_distortion_loss.3} parent=79 // pred_check_branch
                %431 = sbr.rel (0) target = $region102
              $region101: #{rate_distortion_loss.3} parent=79 // pred_region
                %s432 = sdiv.u32.pop %s349, 3
                %s433 = srem.u32.pop %s349, 3
                // While loop
                $region103: #{rate_distortion_loss.3} parent=101 // loop_pre_header
                  _
                $region104: #{rate_distortion_loss.3} parent=101 // loop_header
                  %s435 = sphi 0, %s437
                  %p436 = scmp.ge.s32.totalorder %s435, %s432
                  %s440 = sphi 0, %s463
                  %s441 = sphi %s355, %s466
                  %s442 = sphi %s345, %s467
                $region105: #{rate_distortion_loss.3} parent=101 // loop_header_branch
                  %439 = sbr.rel (%p436) target = $region109
                $region106: #{rate_distortion_loss.3} parent=101 // loop_body
                  %v443 = vld [vmem:[%s441] sm:$0xff]
                  %444 = vst [vmem:[%s442] sm:$0xff] %v443
                  %v445 = vld [vmem:[%s441 + $0x8] sm:$0xff]
                  %446 = vst [vmem:[%s442 + $0x8] sm:$0xff] %v445
                  %v447 = vld [vmem:[%s441 + $0x10] sm:$0xff]
                  %448 = vst [vmem:[%s442 + $0x10] sm:$0xff] %v447
                  %v449 = vld [vmem:[%s441 + $0x20] sm:$0xff]
                  %450 = vst [vmem:[%s442 + $0x18] sm:$0xff] %v449
                  %v451 = vld [vmem:[%s441 + $0x28] sm:$0xff]
                  %452 = vst [vmem:[%s442 + $0x20] sm:$0xff] %v451
                  %v453 = vld [vmem:[%s441 + $0x30] sm:$0xff]
                  %454 = vst [vmem:[%s442 + $0x28] sm:$0xff] %v453
                  %v455 = vld [vmem:[%s441 + $0x40] sm:$0xff]
                  %456 = vst [vmem:[%s442 + $0x30] sm:$0xff] %v455
                  %v457 = vld [vmem:[%s441 + $0x48] sm:$0xff]
                  %458 = vst [vmem:[%s442 + $0x38] sm:$0xff] %v457
                  %v459 = vld [vmem:[%s441 + $0x50] sm:$0xff]
                  %460 = vst [vmem:[%s442 + $0x40] sm:$0xff] %v459
                  %s461 = sadd.s32 1, %s440
                  %p462 = scmp.ge.s32.totalorder %s461, %s432
                  %s463 = scalar_select %p462, 0, %s461
                  %s464 = smul.u32 %s463, 24
                  %s465 = smul.u32 %s463, 24
                  %s466 = scalar_lea.vmem %s355, %s464
                  %s467 = scalar_lea.vmem %s345, %s465 [#allocation5]
                $region107: #{rate_distortion_loss.3} parent=101 // loop_footer
                  %s437 = sadd.s32 %s435, 1
                $region108: #{rate_distortion_loss.3} parent=101 // loop_footer_branch
                  %434 = sbr.rel target = $region104
                $region109: #{rate_distortion_loss.3} parent=101 // loop_exit
                  _
                %s468 = sdiv.u32.pop %s349, 3
                %s469 = srem.u32.pop %s349, 3
                %s470 = smul.u32 %s468, 3
                %s471 = smul.u32 8, %s470
                %s472 = scalar_lea.vmem %s355, %s471
                %s473 = smul.u32 8, %s470
                %s474 = scalar_lea.vmem %s345, %s473 [#allocation5]
                // While loop
                $region110: #{rate_distortion_loss.3} parent=101 // loop_pre_header
                  _
                $region111: #{rate_distortion_loss.3} parent=101 // loop_header
                  %s476 = sphi 0, %s478
                  %p477 = scmp.ge.s32.totalorder %s476, %s469
                  %s481 = sphi 0, %s492
                  %s482 = sphi %s472, %s495
                  %s483 = sphi %s474, %s496
                $region112: #{rate_distortion_loss.3} parent=101 // loop_header_branch
                  %480 = sbr.rel (%p477) target = $region116
                $region113: #{rate_distortion_loss.3} parent=101 // loop_body
                  %v484 = vld [vmem:[%s482] sm:$0xff]
                  %485 = vst [vmem:[%s483] sm:$0xff] %v484
                  %v486 = vld [vmem:[%s482 + $0x20] sm:$0xff]
                  %487 = vst [vmem:[%s483 + $0x18] sm:$0xff] %v486
                  %v488 = vld [vmem:[%s482 + $0x40] sm:$0xff]
                  %489 = vst [vmem:[%s483 + $0x30] sm:$0xff] %v488
                  %s490 = sadd.s32 1, %s481
                  %p491 = scmp.ge.s32.totalorder %s490, %s469
                  %s492 = scalar_select %p491, 0, %s490
                  %s493 = smul.u32 %s492, 8
                  %s494 = smul.u32 %s492, 8
                  %s495 = scalar_lea.vmem %s472, %s493
                  %s496 = scalar_lea.vmem %s474, %s494 [#allocation5]
                $region114: #{rate_distortion_loss.3} parent=101 // loop_footer
                  %s478 = sadd.s32 %s476, 1
                $region115: #{rate_distortion_loss.3} parent=101 // loop_footer_branch
                  %475 = sbr.rel target = $region111
                $region116: #{rate_distortion_loss.3} parent=101 // loop_exit
                  _
              $region102: #{rate_distortion_loss.3} parent=79 // pred_fallthru
                _
              // Predicated region
              $region117: #{rate_distortion_loss.3} parent=79 // pred_check
                _
              $region118: #{rate_distortion_loss.3} parent=79 // pred_check_branch
                %498 = sbr.rel target = $region120
              $region119: #{rate_distortion_loss.3} parent=79 // pred_region
                _
              $region120: #{rate_distortion_loss.3} parent=79 // pred_fallthru
                _
            $region80: #{rate_distortion_loss.3} parent=75 // pred_fallthru
              _
            // Predicated region
            $region81: #{rate_distortion_loss.3} parent=75 // pred_check
              _
            $region82: #{rate_distortion_loss.3} parent=75 // pred_check_branch
              %362 = sbr.rel target = $region84
            $region83: #{rate_distortion_loss.3} parent=75 // pred_region
              %s364 = ssub.s32 256, 1
              %s365 = sdiv.u32.pop %s349, 3
              %s366 = srem.u32.pop %s349, 3
              // While loop
              $region85: #{rate_distortion_loss.3} parent=83 // loop_pre_header
                _
              $region86: #{rate_distortion_loss.3} parent=83 // loop_header
                %s368 = sphi 0, %s370
                %p369 = scmp.ge.s32.totalorder %s368, %s365
                %s373 = sphi 0, %s396
                %s374 = sphi %s355, %s399
                %s375 = sphi %s345, %s400
              $region87: #{rate_distortion_loss.3} parent=83 // loop_header_branch
                %372 = sbr.rel (%p369) target = $region91
              $region88: #{rate_distortion_loss.3} parent=83 // loop_body
                %v376 = vld [vmem:[%s374] sm:%s364]
                %377 = vst [vmem:[%s375] sm:%s364] %v376
                %v378 = vld [vmem:[%s374 + $0x8] sm:%s364]
                %379 = vst [vmem:[%s375 + $0x8] sm:%s364] %v378
                %v380 = vld [vmem:[%s374 + $0x10] sm:%s364]
                %381 = vst [vmem:[%s375 + $0x10] sm:%s364] %v380
                %v382 = vld [vmem:[%s374 + $0x20] sm:%s364]
                %383 = vst [vmem:[%s375 + $0x18] sm:%s364] %v382
                %v384 = vld [vmem:[%s374 + $0x28] sm:%s364]
                %385 = vst [vmem:[%s375 + $0x20] sm:%s364] %v384
                %v386 = vld [vmem:[%s374 + $0x30] sm:%s364]
                %387 = vst [vmem:[%s375 + $0x28] sm:%s364] %v386
                %v388 = vld [vmem:[%s374 + $0x40] sm:%s364]
                %389 = vst [vmem:[%s375 + $0x30] sm:%s364] %v388
                %v390 = vld [vmem:[%s374 + $0x48] sm:%s364]
                %391 = vst [vmem:[%s375 + $0x38] sm:%s364] %v390
                %v392 = vld [vmem:[%s374 + $0x50] sm:%s364]
                %393 = vst [vmem:[%s375 + $0x40] sm:%s364] %v392
                %s394 = sadd.s32 1, %s373
                %p395 = scmp.ge.s32.totalorder %s394, %s365
                %s396 = scalar_select %p395, 0, %s394
                %s397 = smul.u32 %s396, 24
                %s398 = smul.u32 %s396, 24
                %s399 = scalar_lea.vmem %s355, %s397
                %s400 = scalar_lea.vmem %s345, %s398 [#allocation5]
              $region89: #{rate_distortion_loss.3} parent=83 // loop_footer
                %s370 = sadd.s32 %s368, 1
              $region90: #{rate_distortion_loss.3} parent=83 // loop_footer_branch
                %367 = sbr.rel target = $region86
              $region91: #{rate_distortion_loss.3} parent=83 // loop_exit
                _
              %s401 = sdiv.u32.pop %s349, 3
              %s402 = srem.u32.pop %s349, 3
              %s403 = smul.u32 %s401, 3
              %s404 = smul.u32 8, %s403
              %s405 = scalar_lea.vmem %s355, %s404
              %s406 = smul.u32 8, %s403
              %s407 = scalar_lea.vmem %s345, %s406 [#allocation5]
              // While loop
              $region92: #{rate_distortion_loss.3} parent=83 // loop_pre_header
                _
              $region93: #{rate_distortion_loss.3} parent=83 // loop_header
                %s409 = sphi 0, %s411
                %p410 = scmp.ge.s32.totalorder %s409, %s402
                %s414 = sphi 0, %s425
                %s415 = sphi %s405, %s428
                %s416 = sphi %s407, %s429
              $region94: #{rate_distortion_loss.3} parent=83 // loop_header_branch
                %413 = sbr.rel (%p410) target = $region98
              $region95: #{rate_distortion_loss.3} parent=83 // loop_body
                %v417 = vld [vmem:[%s415] sm:%s364]
                %418 = vst [vmem:[%s416] sm:%s364] %v417
                %v419 = vld [vmem:[%s415 + $0x20] sm:%s364]
                %420 = vst [vmem:[%s416 + $0x18] sm:%s364] %v419
                %v421 = vld [vmem:[%s415 + $0x40] sm:%s364]
                %422 = vst [vmem:[%s416 + $0x30] sm:%s364] %v421
                %s423 = sadd.s32 1, %s414
                %p424 = scmp.ge.s32.totalorder %s423, %s402
                %s425 = scalar_select %p424, 0, %s423
                %s426 = smul.u32 %s425, 8
                %s427 = smul.u32 %s425, 8
                %s428 = scalar_lea.vmem %s405, %s426
                %s429 = scalar_lea.vmem %s407, %s427 [#allocation5]
              $region96: #{rate_distortion_loss.3} parent=83 // loop_footer
                %s411 = sadd.s32 %s409, 1
              $region97: #{rate_distortion_loss.3} parent=83 // loop_footer_branch
                %408 = sbr.rel target = $region93
              $region98: #{rate_distortion_loss.3} parent=83 // loop_exit
                _
            $region84: #{rate_distortion_loss.3} parent=75 // pred_fallthru
              _
          $region76: #{rate_distortion_loss.3} parent=71 // pred_fallthru
            _
          %499 = vnop
        $region72: #{rate_distortion_loss.3} parent=15 // pred_fallthru
          _
        // Predicated region
        $region121: #{rate_distortion_loss.3} parent=15 // pred_check
          %p500 = pneg %p101
        $region122: #{rate_distortion_loss.3} parent=15 // pred_check_branch
          %502 = sbr.rel (%p500) target = $region124
        $region123: #{rate_distortion_loss.3} parent=15 // pred_region
          %s503 = smul.u32 3, %s19
          %s504 = ssub.s32 4, %s503
          %p505 = scmp.lt.s32.totalorder %s504, 3
          %s506 = scalar_select %p505, %s504, 3
          %s507 = smul.u32 128, %s506
          %p508 = scmp.lt.s32.totalorder %s18, 1
          %s509 = scalar_select %p508, %s18, 1
          %p510 = scmp.lt.s32.totalorder %s503, 3
          %s511 = scalar_select %p510, %s503, 3
          %s512 = smul.addr %s509, 4
          %s513 = sadd.s32 %s511, %s512
          %s514 = smul.addr %s513, 8
          %s515 = scalar_lea.vmem %s2, %s514
          %s516 = smul.u32 3, %s19
          %s517 = ssub.s32 4, %s516
          %p518 = scmp.lt.s32.totalorder %s517, 3
          %s519 = scalar_select %p518, %s517, 3
          %s520 = smul.u32 128, %s519
        $region124: #{rate_distortion_loss.3} parent=15 // pred_fallthru
          _
      $region16: #{rate_distortion_loss.3} parent=5 // pred_fallthru
        _
      %p521 = scmp.le.s32.totalorder 1, %s11
      %p522 = scmp.lt.s32.totalorder %s11, 5
      %p523 = pnand %p521, %p522
      %p524 = pneg %p523
      // Predicated region
      $region125: #{rate_distortion_loss.3} parent=5 // pred_check
        _
      $region126: #{rate_distortion_loss.3} parent=5 // pred_check_branch
        %526 = sbr.rel (%p523) target = $region128
      $region127: #{rate_distortion_loss.3} parent=5 // pred_region
        %s527 = ssub.s32 %s11, 1
        %s528 = sand.u32 %s38, 1
        %s529 = sand.u32 %s38, 1
        %s530 = smul.addr %s529, 72
        %s531 = scalar_lea.vmem [#allocation4], %s530
        // Predicated region
        $region129: #{rate_distortion_loss.3} parent=127 // pred_check
          %p532 = pneg %p51
        $region130: #{rate_distortion_loss.3} parent=127 // pred_check_branch
          %534 = sbr.rel (%p532) target = $region132
        $region131: #{rate_distortion_loss.3} parent=127 // pred_region
          _
        $region132: #{rate_distortion_loss.3} parent=127 // pred_fallthru
          _
        %s535 = sand.u32 %s66, 1
        %s536 = sand.u32 %s66, 1
        %s537 = smul.addr %s536, 72
        %s538 = scalar_lea.vmem [#allocation5], %s537
        // Predicated region
        $region133: #{rate_distortion_loss.3} parent=127 // pred_check
          %p539 = pneg %p79
        $region134: #{rate_distortion_loss.3} parent=127 // pred_check_branch
          %541 = sbr.rel (%p539) target = $region136
        $region135: #{rate_distortion_loss.3} parent=127 // pred_region
          _
        $region136: #{rate_distortion_loss.3} parent=127 // pred_fallthru
          _
        %s542 = sand.u32 %s38, 1
        %s543 = sand.u32 %s38, 1
        %s544 = smul.addr %s543, 72
        %s545 = scalar_lea.vmem [#allocation4], %s544
        %p546 = pneg %p51
        %p547 = pneg %p48
        %s548 = sand.u32 %s66, 1
        %s549 = sand.u32 %s66, 1
        %s550 = smul.addr %s549, 72
        %s551 = scalar_lea.vmem [#allocation5], %s550
        %p552 = pneg %p79
        %p553 = pneg %p76
        %s554 = smul.u32 3, %s21
        %s555 = ssub.s32 4, %s554
        %p556 = scmp.lt.s32.totalorder %s555, 3
        %s557 = scalar_select %p556, %s555, 3
        %s558 = smul.u32 128, %s557
        %p559 = scmp.lt.s32.totalorder %s20, 1
        %s560 = scalar_select %p559, %s20, 1
        %p561 = scmp.lt.s32.totalorder %s554, 3
        %s562 = scalar_select %p561, %s554, 3
        %s563 = smul.addr %s560, 4
        %s564 = sadd.s32 %s562, %s563
        %s565 = smul.addr %s564, 8
        %s566 = scalar_lea.vmem %s2, %s565
        %p567 = pneg %p107
        %p568 = pneg %p104
        %p569 = pneg %p133
        %p570 = pneg %p130
        %p571 = scmp.lt.s32.totalorder %s20, 1
        %s572 = scalar_select %p571, %s20, 1
        %s573 = scalar_lea.vmem %s3, %s572
        %p574 = pneg %p159
        %p575 = pneg %p156
        %p576 = scmp.lt.s32.totalorder %s20, 1
        %s577 = scalar_select %p576, %s20, 1
        %s578 = scalar_lea.vmem %s4, %s577
        %s579 = smul.u32 3, %s21
        %s580 = ssub.s32 4, %s579
        %p581 = scmp.lt.s32.totalorder %s580, 3
        %s582 = scalar_select %p581, %s580, 3
        %s583 = smul.u32 384, %s582
        %s584 = smul.u32 3, %s21
        %s585 = ssub.s32 4, %s584
        %p586 = scmp.lt.s32.totalorder %s585, 3
        %s587 = scalar_select %p586, %s585, 3
        %s588 = smul.u32 384, %s587
        %s589 = smul.u32 3, %s21
        %s590 = ssub.s32 4, %s589
        %p591 = scmp.lt.s32.totalorder %s590, 3
        %s592 = scalar_select %p591, %s590, 3
        %s593 = smul.u32 128, %s592
        %p594 = scmp.lt.s32.totalorder %s20, 1
        %s595 = scalar_select %p594, %s20, 1
        %p596 = scmp.lt.s32.totalorder %s589, 3
        %s597 = scalar_select %p596, %s589, 3
        %s598 = smul.addr %s595, 4
        %s599 = sadd.s32 %s597, %s598
        %s600 = smul.addr %s599, 8
        %s601 = scalar_lea.vmem %s2, %s600
        %s602 = smul.u32 3, %s21
        %s603 = ssub.s32 4, %s602
        %p604 = scmp.lt.s32.totalorder %s603, 3
        %s605 = scalar_select %p604, %s603, 3
        %s606 = smul.u32 128, %s605
        %p607 = scmp.lt.s32.totalorder %s20, 1
        %s608 = scalar_select %p607, %s20, 1
        %s609 = scalar_lea.vmem %s3, %s608
        %p610 = scmp.lt.s32.totalorder %s20, 1
        %s611 = scalar_select %p610, %s20, 1
        %s612 = scalar_lea.vmem %s4, %s611
        %p613 = scmp.eq.s32.totalorder %s21, 0
        // Predicated region
        $region137: #{rate_distortion_loss.3} parent=127 // pred_check
          %p614 = pneg %p613
        $region138: #{rate_distortion_loss.3} parent=127 // pred_check_branch
          %616 = sbr.rel (%p614) target = $region140
        $region139: #{rate_distortion_loss.3} parent=127 // pred_region
          %617 = vst [vmem:[#allocation2] sm:$0xff] 0.0
          %618 = vst [vmem:[#allocation2 + $0x8] sm:$0xff] 0.0
          %619 = vst [vmem:[#allocation2 + $0x10] sm:$0xff] 0.0
          %620 = vst [vmem:[#allocation3] sm:$0xff] 0.0
          %621 = vst [vmem:[#allocation3 + $0x8] sm:$0xff] 0.0
          %622 = vst [vmem:[#allocation3 + $0x10] sm:$0xff] 0.0
        $region140: #{rate_distortion_loss.3} parent=127 // pred_fallthru
          _
        %v623 = vld [vmem:[%s531] sm:$0xff]
        %v624 = vld [vmem:[%s531 + $0x8] sm:$0xff]
        %v625 = vld [vmem:[%s531 + $0x10] sm:$0xff]
        %v626 = vld [vmem:[%s531 + $0x18] sm:$0xff]
        %v627 = vld [vmem:[%s531 + $0x20] sm:$0xff]
        %v628 = vld [vmem:[%s531 + $0x28] sm:$0xff]
        %v629 = vld [vmem:[%s531 + $0x30] sm:$0xff]
        %v630 = vld [vmem:[%s531 + $0x38] sm:$0xff]
        %v631 = vld [vmem:[%s531 + $0x40] sm:$0xff]
        %v632 = vld [vmem:[%s538] sm:$0xff]
        %v633 = vld [vmem:[%s538 + $0x8] sm:$0xff]
        %v634 = vld [vmem:[%s538 + $0x10] sm:$0xff]
        %v635 = vld [vmem:[%s538 + $0x18] sm:$0xff]
        %v636 = vld [vmem:[%s538 + $0x20] sm:$0xff]
        %v637 = vld [vmem:[%s538 + $0x28] sm:$0xff]
        %v638 = vld [vmem:[%s538 + $0x30] sm:$0xff]
        %v639 = vld [vmem:[%s538 + $0x38] sm:$0xff]
        %v640 = vld [vmem:[%s538 + $0x40] sm:$0xff]
        %v641 = vld [vmem:[%s601] sm:$0xff]
        %v642 = vld [vmem:[%s601 + $0x8] sm:$0xff]
        %v643 = vld [vmem:[%s601 + $0x10] sm:$0xff]
        %v644 = vsub.f32 %v623, %v632
        %v645 = vsub.f32 %v624, %v633
        %v646 = vsub.f32 %v625, %v634
        %v647 = vsub.f32 %v626, %v635
        %v648 = vsub.f32 %v627, %v636
        %v649 = vsub.f32 %v628, %v637
        %v650 = vsub.f32 %v629, %v638
        %v651 = vsub.f32 %v630, %v639
        %v652 = vsub.f32 %v631, %v640
        %v653 = vmul.f32 %v644, %v644
        %v654 = vmul.f32 %v645, %v645
        %v655 = vmul.f32 %v646, %v646
        %v656 = vmul.f32 %v647, %v647
        %v657 = vmul.f32 %v648, %v648
        %v658 = vmul.f32 %v649, %v649
        %v659 = vmul.f32 %v650, %v650
        %v660 = vmul.f32 %v651, %v651
        %v661 = vmul.f32 %v652, %v652
        %v662 = vmul.f32 %v653, %v641
        %v663 = vmul.f32 %v654, %v642
        %v664 = vmul.f32 %v655, %v643
        %v665 = vmul.f32 %v656, %v641
        %v666 = vmul.f32 %v657, %v642
        %v667 = vmul.f32 %v658, %v643
        %v668 = vmul.f32 %v659, %v641
        %v669 = vmul.f32 %v660, %v642
        %v670 = vmul.f32 %v661, %v643
        %v671 = vadd.f32 %v662, %v665
        %v672 = vadd.f32 %v671, %v668
        %v673 = vadd.f32 %v663, %v666
        %v674 = vadd.f32 %v673, %v669
        %v675 = vadd.f32 %v664, %v667
        %v676 = vadd.f32 %v675, %v670
        %v677 = vmax.f32 %v623, 0.0
        %v678 = vmax.f32 %v624, 0.0
        %v679 = vmax.f32 %v625, 0.0
        %v680 = vmax.f32 %v626, 0.0
        %v681 = vmax.f32 %v627, 0.0
        %v682 = vmax.f32 %v628, 0.0
        %v683 = vmax.f32 %v629, 0.0
        %v684 = vmax.f32 %v630, 0.0
        %v685 = vmax.f32 %v631, 0.0
        %v686 = vmin.f32 %v677, 1.0
        %v687 = vmin.f32 %v678, 1.0
        %v688 = vmin.f32 %v679, 1.0
        %v689 = vmin.f32 %v680, 1.0
        %v690 = vmin.f32 %v681, 1.0
        %v691 = vmin.f32 %v682, 1.0
        %v692 = vmin.f32 %v683, 1.0
        %v693 = vmin.f32 %v684, 1.0
        %v694 = vmin.f32 %v685, 1.0
        %v695 = vsub.f32 %v686, %v632
        %v696 = vsub.f32 %v687, %v633
        %v697 = vsub.f32 %v688, %v634
        %v698 = vsub.f32 %v689, %v635
        %v699 = vsub.f32 %v690, %v636
        %v700 = vsub.f32 %v691, %v637
        %v701 = vsub.f32 %v692, %v638
        %v702 = vsub.f32 %v693, %v639
        %v703 = vsub.f32 %v694, %v640
        %v704 = vmul.f32 %v695, %v695
        %v705 = vmul.f32 %v696, %v696
        %v706 = vmul.f32 %v697, %v697
        %v707 = vmul.f32 %v698, %v698
        %v708 = vmul.f32 %v699, %v699
        %v709 = vmul.f32 %v700, %v700
        %v710 = vmul.f32 %v701, %v701
        %v711 = vmul.f32 %v702, %v702
        %v712 = vmul.f32 %v703, %v703
        %v713 = vadd.f32 %v704, %v707
        %v714 = vadd.f32 %v713, %v710
        %v715 = vadd.f32 %v705, %v708
        %v716 = vadd.f32 %v715, %v711
        %v717 = vadd.f32 %v706, %v709
        %v718 = vadd.f32 %v717, %v712
        %v719 = vlaneseq
        %v720 = vshrl.u32 %v719, 7
        %v721 = vadd.s32 %v720, 8
        %v722 = vadd.s32 %v720, 16
        %s723 = smul.u32 %s21, 24
        %v724 = vstv %s723
        %v725 = vadd.s32 %v724, %v720
        %v726 = vadd.s32 %v724, %v721
        %v727 = vadd.s32 %v724, %v722
        %vm728 = vcmp.lt.s32.totalorder %v725, 32
        %vm729 = vcmp.lt.s32.totalorder %v726, 32
        %vm730 = vcmp.lt.s32.totalorder %v727, 32
        %v731 = vsel %vm728, %v672, 0.0
        %v732 = vsel %vm729, %v674, 0.0
        %v733 = vsel %vm730, %v676, 0.0
        %v734 = vsel %vm728, %v714, 0.0
        %v735 = vsel %vm729, %v716, 0.0
        %v736 = vsel %vm730, %v718, 0.0
        %v737 = vld [vmem:[#allocation2] sm:$0xff]
        %v738 = vld [vmem:[#allocation2 + $0x8] sm:$0xff]
        %v739 = vld [vmem:[#allocation2 + $0x10] sm:$0xff]
        %v740 = vadd.f32 %v737, %v731
        %v741 = vadd.f32 %v738, %v732
        %v742 = vadd.f32 %v739, %v733
        %743 = vst [vmem:[#allocation2] sm:$0xff] %v740
        %744 = vst [vmem:[#allocation2 + $0x8] sm:$0xff] %v741
        %745 = vst [vmem:[#allocation2 + $0x10] sm:$0xff] %v742
        %v746 = vld [vmem:[#allocation3] sm:$0xff]
        %v747 = vld [vmem:[#allocation3 + $0x8] sm:$0xff]
        %v748 = vld [vmem:[#allocation3 + $0x10] sm:$0xff]
        %v749 = vadd.f32 %v746, %v734
        %v750 = vadd.f32 %v747, %v735
        %v751 = vadd.f32 %v748, %v736
        %752 = vst [vmem:[#allocation3] sm:$0xff] %v749
        %753 = vst [vmem:[#allocation3 + $0x8] sm:$0xff] %v750
        %754 = vst [vmem:[#allocation3 + $0x10] sm:$0xff] %v751
        %p755 = scmp.eq.s32.totalorder %s21, 1
        // Predicated region
        $region141: #{rate_distortion_loss.3} parent=127 // pred_check
          %p756 = pneg %p755
        $region142: #{rate_distortion_loss.3} parent=127 // pred_check_branch
          %758 = sbr.rel (%p756) target = $region144
        $region143: #{rate_distortion_loss.3} parent=127 // pred_region
          %v759 = vld [vmem:[#allocation2] sm:$0xff]
          %v760 = vld [vmem:[#allocation2 + $0x8] sm:$0xff]
          %v761 = vld [vmem:[#allocation2 + $0x10] sm:$0xff]
          %v762 = vadd.f32 %v759, %v760
          %v763 = vadd.f32 %v762, %v761
          %764 = vadd.xlane.f32.xlu0 %v763
          %v765 = vpop.xlane.xlu0 %764
          %v766 = vrot.slane %v765, 4
          %v767 = vadd.f32 %v765, %v766
          %v768 = vrot.slane %v767, 2
          %v769 = vadd.f32 %v767, %v768
          %v770 = vrot.slane %v769, 1
          %v771 = vadd.f32 %v769, %v770
          %s772 = vtos %v771
          %v773 = vstv %s772
          %vm774 = vcmask 0
          %775 = vst.msk [vmem:[%s609] sm:$0x1] %vm774, %v773
          %v776 = vld [vmem:[#allocation3] sm:$0xff]
          %v777 = vld [vmem:[#allocation3 + $0x8] sm:$0xff]
          %v778 = vld [vmem:[#allocation3 + $0x10] sm:$0xff]
          %v779 = vadd.f32 %v776, %v777
          %v780 = vadd.f32 %v779, %v778
          %781 = vadd.xlane.f32.xlu0 %v780
          %v782 = vpop.xlane.xlu0 %781
          %v783 = vrot.slane %v782, 4
          %v784 = vadd.f32 %v782, %v783
          %v785 = vrot.slane %v784, 2
          %v786 = vadd.f32 %v784, %v785
          %v787 = vrot.slane %v786, 1
          %v788 = vadd.f32 %v786, %v787
          %s789 = vtos %v788
          %v790 = vstv %s789
          %791 = vst.msk [vmem:[%s612] sm:$0x1] %vm774, %v790
        $region144: #{rate_distortion_loss.3} parent=127 // pred_fallthru
          _
        %p792 = scmp.lt.s32.totalorder %s20, 1
        %s793 = scalar_select %p792, %s20, 1
        %s794 = scalar_lea.vmem %s3, %s793
        %p795 = scmp.lt.s32.totalorder %s20, 1
        %s796 = scalar_select %p795, %s20, 1
        %s797 = scalar_lea.vmem %s4, %s796
        // Predicated region
        $region145: #{rate_distortion_loss.3} parent=127 // pred_check
          %p798 = pneg %p130
        $region146: #{rate_distortion_loss.3} parent=127 // pred_check_branch
          %800 = sbr.rel (%p798) target = $region148
        $region147: #{rate_distortion_loss.3} parent=127 // pred_region
          _
        $region148: #{rate_distortion_loss.3} parent=127 // pred_fallthru
          _
        // Predicated region
        $region149: #{rate_distortion_loss.3} parent=127 // pred_check
          %p801 = pneg %p156
        $region150: #{rate_distortion_loss.3} parent=127 // pred_check_branch
          %803 = sbr.rel (%p801) target = $region152
        $region151: #{rate_distortion_loss.3} parent=127 // pred_region
          _
        $region152: #{rate_distortion_loss.3} parent=127 // pred_fallthru
          _
      $region128: #{rate_distortion_loss.3} parent=5 // pred_fallthru
        _
      %p804 = scmp.le.s32.totalorder 2, %s11
      // Predicated region
      $region153: #{rate_distortion_loss.3} parent=5 // pred_check
        %p805 = pneg %p804
      $region154: #{rate_distortion_loss.3} parent=5 // pred_check_branch
        %807 = sbr.rel (%p805) target = $region156
      $region155: #{rate_distortion_loss.3} parent=5 // pred_region
        %s808 = ssub.s32 %s11, 2
        // Predicated region
        $region157: #{rate_distortion_loss.3} parent=155 // pred_check
          %p809 = pneg %p136
        $region158: #{rate_distortion_loss.3} parent=155 // pred_check_branch
          %811 = sbr.rel (%p809) target = $region160
        $region159: #{rate_distortion_loss.3} parent=155 // pred_region
          %p812 = scmp.lt.s32.totalorder %s22, 1
          %s813 = scalar_select %p812, %s22, 1
          %s814 = scalar_lea.vmem %s3, %s813
        $region160: #{rate_distortion_loss.3} parent=155 // pred_fallthru
          _
        // Predicated region
        $region161: #{rate_distortion_loss.3} parent=155 // pred_check
          %p815 = pneg %p162
        $region162: #{rate_distortion_loss.3} parent=155 // pred_check_branch
          %817 = sbr.rel (%p815) target = $region164
        $region163: #{rate_distortion_loss.3} parent=155 // pred_region
          %p818 = scmp.lt.s32.totalorder %s22, 1
          %s819 = scalar_select %p818, %s22, 1
          %s820 = scalar_lea.vmem %s4, %s819
        $region164: #{rate_distortion_loss.3} parent=155 // pred_fallthru
          _
      $region156: #{rate_distortion_loss.3} parent=5 // pred_fallthru
        _
    $region6: #{rate_distortion_loss.3} parent=1 // loop_footer
      %s15 = sadd.s32 1, %s11
    $region7: #{rate_distortion_loss.3} parent=1 // loop_footer_branch
      %10 = sbr.rel target = $region3
    $region8: #{rate_distortion_loss.3} parent=1 // loop_exit
      _

</llo_original>
